<compile_context>
chip_gen: v7x
topology: tpu7x:2x2x1
jax: 0.10.0
libtpu: 0.0.40
codegen_flags: <defaults>
</compile_context>

<pallas_src>
import functools

import jax
import jax.numpy as jnp
from jax import lax
from jax.experimental import pallas as pl
from jax.experimental.pallas import tpu as pltpu

_EPS = 1e-5


def _residual_block_kernel(x_ref, w1_ref, w2_ref, gb1_ref, gb2_ref, m_ref, o_ref,
                           *, N, C, H, W):
    """Fused residual block on a lane-dense slab.

    x_ref  : (H, L) with L = C*N*W; lane = c*(N*W) + n*W + w
    wK_ref : (9*C, L) conv-K weights; row t*C+d holds W_K[(co-d)%C -> co, tap t]
             broadcast over the N*W lanes of output-channel block co
    gbK_ref: (2, L)   row 0 = gamma, row 1 = beta (per-channel, lane-broadcast)
    m_ref  : (L, L)   0/1 block-sum matrix (1 iff same channel block)
    o_ref  : (H, L)   output slab, same layout as x
    """
    NW = N * W
    L = C * NW
    count = float(N * H * W)

    x = x_ref[...]

    # Halo-validity index vectors (built once, reused by every tap).
    row_ids = lax.broadcasted_iota(jnp.int32, (H, 1), 0)
    w_ids = lax.broadcasted_iota(jnp.int32, (1, L), 1) % W

    def shifted(src, di, dj):
        # result[h, (c,n,w)] = src[h+di, (c,n,w+dj)], zero outside the image.
        if di == 0 and dj == 0:
            return src
        t = src
        ok = None
        if di != 0:
            t = pltpu.roll(t, shift=(-di) % H, axis=0)          # sublane shift
            ok = (row_ids + di >= 0) & (row_ids + di <= H - 1)
        if dj != 0:
            t = pltpu.roll(t, shift=(-dj) % L, axis=1)          # lane shift
            w_ok = (w_ids + dj >= 0) & (w_ids + dj <= W - 1)
            ok = w_ok if ok is None else (ok & w_ok)
        return jnp.where(ok, t, 0.0)

    def conv3x3(src, w_ref):
        # C independent accumulator chains (one per channel-roll distance d).
        accs = [jnp.zeros((H, L), jnp.float32) for _ in range(C)]
        for di in (-1, 0, 1):
            for dj in (-1, 0, 1):
                tap = (di + 1) * 3 + (dj + 1)
                s = shifted(src, di, dj)
                for d in range(C):
                    # circular lane roll by d*NW maps channel block (co-d)%C -> co
                    sd = s if d == 0 else pltpu.roll(s, shift=d * NW, axis=1)
                    r = tap * C + d
                    wrow = w_ref[r:r + 1, :]                     # (1, L) weights
                    accs[d] = accs[d] + sd * wrow
        total = accs[0]
        for a in accs[1:]:
            total = total + a
        return total

    def batch_norm(y, gb_ref):
        # One-pass train-mode BN: per-channel mean / E[y^2] via a row reduce
        # followed by a block-sum matmul (stats broadcast back onto the lanes).
        s = jnp.sum(y, axis=0, keepdims=True)                    # (1, L)
        ss = jnp.sum(y * y, axis=0, keepdims=True)               # (1, L)
        mean = jnp.dot(s, m_ref[...],
                       preferred_element_type=jnp.float32) * (1.0 / count)
        msq = jnp.dot(ss, m_ref[...],
                      preferred_element_type=jnp.float32) * (1.0 / count)
        var = msq - mean * mean                                  # biased variance
        inv = lax.rsqrt(var + _EPS)
        gamma = gb_ref[0:1, :]
        beta = gb_ref[1:2, :]
        return (y - mean) * (inv * gamma) + beta

    y = conv3x3(x, w1_ref)
    y = batch_norm(y, gb1_ref)
    y = jnp.maximum(y, 0.0)

    y = conv3x3(y, w2_ref)
    y = batch_norm(y, gb2_ref)

    o_ref[...] = jnp.maximum(y + x, 0.0)                         # lane-dense store


def s_residual_block_forward(x_nchw, w1, g1, b1, w2, g2, b2):
    """x_nchw: (N, C, H, W); w: (Cout, Cin, 3, 3); g/b: (C,)."""
    N, C, H, W = x_nchw.shape
    NW = N * W
    L = C * NW
    f32 = jnp.float32

    # Activations -> lane-dense slab: row = h, lane = c*(N*W) + n*W + w.
    x_slab = jnp.transpose(x_nchw.astype(f32), (2, 1, 0, 3)).reshape(H, L)

    def prep_w(w):
        # (Cout, Cin, kh, kw) -> (tap, Cin, Cout) -> per-(tap, roll d) lane rows.
        wt = jnp.transpose(w.astype(f32), (2, 3, 1, 0)).reshape(9, C, C)
        co = jnp.arange(C)
        rows = []
        for t in range(9):
            for d in range(C):
                ci = (co - d) % C
                per_co = wt[t, ci, co]                  # weight for block co
                rows.append(jnp.repeat(per_co, NW))     # broadcast over block lanes
        return jnp.stack(rows, axis=0)                  # (9*C, L)

    def prep_gb(g, b):
        return jnp.stack([jnp.repeat(g.astype(f32), NW),
                          jnp.repeat(b.astype(f32), NW)], axis=0)   # (2, L)

    blk = jnp.arange(L) // NW
    block_sum = (blk[:, None] == blk[None, :]).astype(f32)          # (L, L)

    kernel = functools.partial(_residual_block_kernel, N=N, C=C, H=H, W=W)
    vmem = pl.BlockSpec(memory_space=pltpu.MemorySpace.VMEM)

    flops = 2 * (2 * 9 * N * H * W * C * C)          # two 3x3 convs (mul+add)
    bytes_accessed = (2 * H * L + 2 * 9 * C * L + 2 * 2 * L + L * L) * 4

    out_slab = pl.pallas_call(
        kernel,
        out_shape=jax.ShapeDtypeStruct((H, L), f32),
        in_specs=[vmem] * 6,
        out_specs=vmem,
        cost_estimate=pl.CostEstimate(flops=flops, transcendentals=2 * L,
                                      bytes_accessed=bytes_accessed),
    )(x_slab, prep_w(w1), prep_w(w2), prep_gb(g1, b1), prep_gb(g2, b2), block_sum)

    # Slab -> NCHW.
    return jnp.transpose(out_slab.reshape(H, C, N, W), (2, 1, 0, 3))


def _reference_forward(x, w1, g1, b1, w2, g2, b2):
    """Pure-JAX reference of the PyTorch forward (train-mode BN)."""
    def conv(y, w):
        return lax.conv_general_dilated(
            y, w, window_strides=(1, 1), padding=((1, 1), (1, 1)),
            dimension_numbers=("NCHW", "OIHW", "NCHW"),
            precision=lax.Precision.HIGHEST)

    def bn(y, g, b):
        mean = jnp.mean(y, axis=(0, 2, 3), keepdims=True)
        var = jnp.mean((y - mean) ** 2, axis=(0, 2, 3), keepdims=True)
        return ((y - mean) * lax.rsqrt(var + _EPS)
                * g.reshape(1, -1, 1, 1) + b.reshape(1, -1, 1, 1))

    y = jax.nn.relu(bn(conv(x, w1), g1, b1))
    y = bn(conv(y, w2), g2, b2)
    return jax.nn.relu(y + x)


if __name__ == "__main__":
    key = jax.random.PRNGKey(0)
    N, C, H, W = 2, 4, 16, 16
    kx, k1, k2 = jax.random.split(key, 3)

    x = jax.random.normal(kx, (N, C, H, W), jnp.float32)

    # s_conv init: Conv2d weight ~ Normal(std = 2 / filter_size^2 / out_channel)
    std = 2.0 / 3.0 / 3.0 / C
    w1 = jax.random.normal(k1, (C, C, 3, 3), jnp.float32) * std
    w2 = jax.random.normal(k2, (C, C, 3, 3), jnp.float32) * std

    # BatchNorm2d default init: gamma = 1, beta = 0
    g1 = jnp.ones((C,), jnp.float32)
    b1 = jnp.zeros((C,), jnp.float32)
    g2 = jnp.ones((C,), jnp.float32)
    b2 = jnp.zeros((C,), jnp.float32)

    out = s_residual_block_forward(x, w1, g1, b1, w2, g2, b2)
    out = jax.block_until_ready(out)

    ref = _reference_forward(x, w1, g1, b1, w2, g2, b2)
    max_err = float(jnp.max(jnp.abs(out - ref)))
    if out.shape != ref.shape or not (max_err < 1e-3):
        raise AssertionError(f"kernel mismatch vs reference: max abs err = {max_err}")

    print("KERNEL_OK")
</pallas_src>

<mosaic_0001>
module attributes {stable_mosaic.version = 11 : i64} {
  func.func @_residual_block_kernel(%arg0: memref<16x128xf32, #tpu.memory_space<vmem>>, %arg1: memref<36x128xf32, #tpu.memory_space<vmem>>, %arg2: memref<36x128xf32, #tpu.memory_space<vmem>>, %arg3: memref<2x128xf32, #tpu.memory_space<vmem>>, %arg4: memref<2x128xf32, #tpu.memory_space<vmem>>, %arg5: memref<128x128xf32, #tpu.memory_space<vmem>>, %arg6: memref<16x128xf32, #tpu.memory_space<vmem>>) attributes {dimension_semantics = [], scalar_prefetch = 0 : i64, scratch_operands = 0 : i64, tpu.core_type = #tpu.core_type<tc>} {
    %c0 = arith.constant 0 : index
    %c0_0 = arith.constant 0 : index
    %0 = vector.load %arg0[%c0, %c0_0] : memref<16x128xf32, #tpu.memory_space<vmem>>, vector<16x128xf32>
    %1 = tpu.iota {dimensions = array<i32: 0>} : vector<16x1xi32>
    %2 = tpu.iota {dimensions = array<i32: 1>} : vector<1x128xi32>
    %c16_i32 = arith.constant 16 : i32
    %c0_i32 = arith.constant 0 : i32
    %3 = arith.cmpi eq, %c16_i32, %c0_i32 : i32
    %c1_i32 = arith.constant 1 : i32
    %4 = arith.select %3, %c1_i32, %c16_i32 : i32
    %5 = vector.broadcast %4 : i32 to vector<1x128xi32>
    %6 = arith.remsi %2, %5 : vector<1x128xi32>
    %c0_i32_1 = arith.constant 0 : i32
    %7 = vector.broadcast %c0_i32_1 : i32 to vector<1x128xi32>
    %8 = arith.cmpi ne, %6, %7 : vector<1x128xi32>
    %c0_i32_2 = arith.constant 0 : i32
    %9 = vector.broadcast %c0_i32_2 : i32 to vector<1x128xi32>
    %10 = arith.cmpi slt, %6, %9 : vector<1x128xi32>
    %c0_i32_3 = arith.constant 0 : i32
    %11 = arith.cmpi slt, %4, %c0_i32_3 : i32
    %12 = vector.broadcast %11 : i1 to vector<1x128xi1>
    %13 = vector.broadcast %12 : vector<1x128xi1> to vector<1x128xi1>
    %14 = arith.xori %10, %13 : vector<1x128xi1>
    %15 = arith.andi %14, %8 : vector<1x128xi1>
    %16 = vector.broadcast %4 : i32 to vector<1x128xi32>
    %17 = arith.addi %6, %16 : vector<1x128xi32>
    %18 = arith.select %15, %17, %6 : vector<1x128xi1>, vector<1x128xi32>
    %cst = arith.constant 0.000000e+00 : f32
    %19 = vector.broadcast %cst : f32 to vector<16x128xf32>
    %cst_4 = arith.constant 0.000000e+00 : f32
    %20 = vector.broadcast %cst_4 : f32 to vector<16x128xf32>
    %cst_5 = arith.constant 0.000000e+00 : f32
    %21 = vector.broadcast %cst_5 : f32 to vector<16x128xf32>
    %cst_6 = arith.constant 0.000000e+00 : f32
    %22 = vector.broadcast %cst_6 : f32 to vector<16x128xf32>
    %c1_i32_7 = arith.constant 1 : i32
    %23 = tpu.dynamic_rotate %0 by %c1_i32_7 dim 0 : vector<16x128xf32>, i32 -> vector<16x128xf32>
    %c-1_i32 = arith.constant -1 : i32
    %24 = vector.broadcast %c-1_i32 : i32 to vector<16x1xi32>
    %25 = arith.addi %1, %24 : vector<16x1xi32>
    %c0_i32_8 = arith.constant 0 : i32
    %26 = vector.broadcast %c0_i32_8 : i32 to vector<16x1xi32>
    %27 = arith.cmpi sge, %25, %26 : vector<16x1xi32>
    %c-1_i32_9 = arith.constant -1 : i32
    %28 = vector.broadcast %c-1_i32_9 : i32 to vector<16x1xi32>
    %29 = arith.addi %1, %28 : vector<16x1xi32>
    %c15_i32 = arith.constant 15 : i32
    %30 = vector.broadcast %c15_i32 : i32 to vector<16x1xi32>
    %31 = arith.cmpi sle, %29, %30 : vector<16x1xi32>
    %32 = arith.andi %27, %31 : vector<16x1xi1>
    %c1_i32_10 = arith.constant 1 : i32
    %33 = tpu.dynamic_rotate %23 by %c1_i32_10 dim 1 : vector<16x128xf32>, i32 -> vector<16x128xf32>
    %c-1_i32_11 = arith.constant -1 : i32
    %34 = vector.broadcast %c-1_i32_11 : i32 to vector<1x128xi32>
    %35 = arith.addi %18, %34 : vector<1x128xi32>
    %c0_i32_12 = arith.constant 0 : i32
    %36 = vector.broadcast %c0_i32_12 : i32 to vector<1x128xi32>
    %37 = arith.cmpi sge, %35, %36 : vector<1x128xi32>
    %c-1_i32_13 = arith.constant -1 : i32
    %38 = vector.broadcast %c-1_i32_13 : i32 to vector<1x128xi32>
    %39 = arith.addi %18, %38 : vector<1x128xi32>
    %c15_i32_14 = arith.constant 15 : i32
    %40 = vector.broadcast %c15_i32_14 : i32 to vector<1x128xi32>
    %41 = arith.cmpi sle, %39, %40 : vector<1x128xi32>
    %42 = arith.andi %37, %41 : vector<1x128xi1>
    %43 = vector.broadcast %32 : vector<16x1xi1> to vector<16x128xi1>
    %44 = vector.broadcast %42 : vector<1x128xi1> to vector<16x128xi1>
    %45 = arith.andi %43, %44 : vector<16x128xi1>
    %cst_15 = arith.constant 0.000000e+00 : f32
    %46 = vector.broadcast %cst_15 : f32 to vector<16x128xf32>
    %47 = arith.select %45, %33, %46 : vector<16x128xi1>, vector<16x128xf32>
    %c0_16 = arith.constant 0 : index
    %c0_17 = arith.constant 0 : index
    %48 = vector.load %arg1[%c0_16, %c0_17] : memref<36x128xf32, #tpu.memory_space<vmem>>, vector<1x128xf32>
    %49 = vector.broadcast %48 : vector<1x128xf32> to vector<16x128xf32>
    %50 = arith.mulf %47, %49 : vector<16x128xf32>
    %51 = arith.addf %19, %50 : vector<16x128xf32>
    %c32_i32 = arith.constant 32 : i32
    %52 = tpu.dynamic_rotate %47 by %c32_i32 dim 1 : vector<16x128xf32>, i32 -> vector<16x128xf32>
    %c1 = arith.constant 1 : index
    %c0_18 = arith.constant 0 : index
    %53 = vector.load %arg1[%c1, %c0_18] : memref<36x128xf32, #tpu.memory_space<vmem>>, vector<1x128xf32>
    %54 = vector.broadcast %53 : vector<1x128xf32> to vector<16x128xf32>
    %55 = arith.mulf %52, %54 : vector<16x128xf32>
    %56 = arith.addf %20, %55 : vector<16x128xf32>
    %c64_i32 = arith.constant 64 : i32
    %57 = tpu.dynamic_rotate %47 by %c64_i32 dim 1 : vector<16x128xf32>, i32 -> vector<16x128xf32>
    %c2 = arith.constant 2 : index
    %c0_19 = arith.constant 0 : index
    %58 = vector.load %arg1[%c2, %c0_19] : memref<36x128xf32, #tpu.memory_space<vmem>>, vector<1x128xf32>
    %59 = vector.broadcast %58 : vector<1x128xf32> to vector<16x128xf32>
    %60 = arith.mulf %57, %59 : vector<16x128xf32>
    %61 = arith.addf %21, %60 : vector<16x128xf32>
    %c96_i32 = arith.constant 96 : i32
    %62 = tpu.dynamic_rotate %47 by %c96_i32 dim 1 : vector<16x128xf32>, i32 -> vector<16x128xf32>
    %c3 = arith.constant 3 : index
    %c0_20 = arith.constant 0 : index
    %63 = vector.load %arg1[%c3, %c0_20] : memref<36x128xf32, #tpu.memory_space<vmem>>, vector<1x128xf32>
    %64 = vector.broadcast %63 : vector<1x128xf32> to vector<16x128xf32>
    %65 = arith.mulf %62, %64 : vector<16x128xf32>
    %66 = arith.addf %22, %65 : vector<16x128xf32>
    %c1_i32_21 = arith.constant 1 : i32
    %67 = tpu.dynamic_rotate %0 by %c1_i32_21 dim 0 : vector<16x128xf32>, i32 -> vector<16x128xf32>
    %c-1_i32_22 = arith.constant -1 : i32
    %68 = vector.broadcast %c-1_i32_22 : i32 to vector<16x1xi32>
    %69 = arith.addi %1, %68 : vector<16x1xi32>
    %c0_i32_23 = arith.constant 0 : i32
    %70 = vector.broadcast %c0_i32_23 : i32 to vector<16x1xi32>
    %71 = arith.cmpi sge, %69, %70 : vector<16x1xi32>
    %c-1_i32_24 = arith.constant -1 : i32
    %72 = vector.broadcast %c-1_i32_24 : i32 to vector<16x1xi32>
    %73 = arith.addi %1, %72 : vector<16x1xi32>
    %c15_i32_25 = arith.constant 15 : i32
    %74 = vector.broadcast %c15_i32_25 : i32 to vector<16x1xi32>
    %75 = arith.cmpi sle, %73, %74 : vector<16x1xi32>
    %76 = arith.andi %71, %75 : vector<16x1xi1>
    %cst_26 = arith.constant 0.000000e+00 : f32
    %77 = vector.shape_cast %76 : vector<16x1xi1> to vector<16x1xi1>
    %78 = vector.broadcast %77 : vector<16x1xi1> to vector<16x128xi1>
    %79 = vector.broadcast %cst_26 : f32 to vector<16x128xf32>
    %80 = arith.select %78, %67, %79 : vector<16x128xi1>, vector<16x128xf32>
    %c4 = arith.constant 4 : index
    %c0_27 = arith.constant 0 : index
    %81 = vector.load %arg1[%c4, %c0_27] : memref<36x128xf32, #tpu.memory_space<vmem>>, vector<1x128xf32>
    %82 = vector.broadcast %81 : vector<1x128xf32> to vector<16x128xf32>
    %83 = arith.mulf %80, %82 : vector<16x128xf32>
    %84 = arith.addf %51, %83 : vector<16x128xf32>
    %c32_i32_28 = arith.constant 32 : i32
    %85 = tpu.dynamic_rotate %80 by %c32_i32_28 dim 1 : vector<16x128xf32>, i32 -> vector<16x128xf32>
    %c5 = arith.constant 5 : index
    %c0_29 = arith.constant 0 : index
    %86 = vector.load %arg1[%c5, %c0_29] : memref<36x128xf32, #tpu.memory_space<vmem>>, vector<1x128xf32>
    %87 = vector.broadcast %86 : vector<1x128xf32> to vector<16x128xf32>
    %88 = arith.mulf %85, %87 : vector<16x128xf32>
    %89 = arith.addf %56, %88 : vector<16x128xf32>
    %c64_i32_30 = arith.constant 64 : i32
    %90 = tpu.dynamic_rotate %80 by %c64_i32_30 dim 1 : vector<16x128xf32>, i32 -> vector<16x128xf32>
    %c6 = arith.constant 6 : index
    %c0_31 = arith.constant 0 : index
    %91 = vector.load %arg1[%c6, %c0_31] : memref<36x128xf32, #tpu.memory_space<vmem>>, vector<1x128xf32>
    %92 = vector.broadcast %91 : vector<1x128xf32> to vector<16x128xf32>
    %93 = arith.mulf %90, %92 : vector<16x128xf32>
    %94 = arith.addf %61, %93 : vector<16x128xf32>
    %c96_i32_32 = arith.constant 96 : i32
    %95 = tpu.dynamic_rotate %80 by %c96_i32_32 dim 1 : vector<16x128xf32>, i32 -> vector<16x128xf32>
    %c7 = arith.constant 7 : index
    %c0_33 = arith.constant 0 : index
    %96 = vector.load %arg1[%c7, %c0_33] : memref<36x128xf32, #tpu.memory_space<vmem>>, vector<1x128xf32>
    %97 = vector.broadcast %96 : vector<1x128xf32> to vector<16x128xf32>
    %98 = arith.mulf %95, %97 : vector<16x128xf32>
    %99 = arith.addf %66, %98 : vector<16x128xf32>
    %c1_i32_34 = arith.constant 1 : i32
    %100 = tpu.dynamic_rotate %0 by %c1_i32_34 dim 0 : vector<16x128xf32>, i32 -> vector<16x128xf32>
    %c-1_i32_35 = arith.constant -1 : i32
    %101 = vector.broadcast %c-1_i32_35 : i32 to vector<16x1xi32>
    %102 = arith.addi %1, %101 : vector<16x1xi32>
    %c0_i32_36 = arith.constant 0 : i32
    %103 = vector.broadcast %c0_i32_36 : i32 to vector<16x1xi32>
    %104 = arith.cmpi sge, %102, %103 : vector<16x1xi32>
    %c-1_i32_37 = arith.constant -1 : i32
    %105 = vector.broadcast %c-1_i32_37 : i32 to vector<16x1xi32>
    %106 = arith.addi %1, %105 : vector<16x1xi32>
    %c15_i32_38 = arith.constant 15 : i32
    %107 = vector.broadcast %c15_i32_38 : i32 to vector<16x1xi32>
    %108 = arith.cmpi sle, %106, %107 : vector<16x1xi32>
    %109 = arith.andi %104, %108 : vector<16x1xi1>
    %c127_i32 = arith.constant 127 : i32
    %110 = tpu.dynamic_rotate %100 by %c127_i32 dim 1 : vector<16x128xf32>, i32 -> vector<16x128xf32>
    %c1_i32_39 = arith.constant 1 : i32
    %111 = vector.broadcast %c1_i32_39 : i32 to vector<1x128xi32>
    %112 = arith.addi %18, %111 : vector<1x128xi32>
    %c0_i32_40 = arith.constant 0 : i32
    %113 = vector.broadcast %c0_i32_40 : i32 to vector<1x128xi32>
    %114 = arith.cmpi sge, %112, %113 : vector<1x128xi32>
    %c1_i32_41 = arith.constant 1 : i32
    %115 = vector.broadcast %c1_i32_41 : i32 to vector<1x128xi32>
    %116 = arith.addi %18, %115 : vector<1x128xi32>
    %c15_i32_42 = arith.constant 15 : i32
    %117 = vector.broadcast %c15_i32_42 : i32 to vector<1x128xi32>
    %118 = arith.cmpi sle, %116, %117 : vector<1x128xi32>
    %119 = arith.andi %114, %118 : vector<1x128xi1>
    %120 = vector.broadcast %109 : vector<16x1xi1> to vector<16x128xi1>
    %121 = vector.broadcast %119 : vector<1x128xi1> to vector<16x128xi1>
    %122 = arith.andi %120, %121 : vector<16x128xi1>
    %cst_43 = arith.constant 0.000000e+00 : f32
    %123 = vector.broadcast %cst_43 : f32 to vector<16x128xf32>
    %124 = arith.select %122, %110, %123 : vector<16x128xi1>, vector<16x128xf32>
    %c8 = arith.constant 8 : index
    %c0_44 = arith.constant 0 : index
    %125 = vector.load %arg1[%c8, %c0_44] : memref<36x128xf32, #tpu.memory_space<vmem>>, vector<1x128xf32>
    %126 = vector.broadcast %125 : vector<1x128xf32> to vector<16x128xf32>
    %127 = arith.mulf %124, %126 : vector<16x128xf32>
    %128 = arith.addf %84, %127 : vector<16x128xf32>
    %c32_i32_45 = arith.constant 32 : i32
    %129 = tpu.dynamic_rotate %124 by %c32_i32_45 dim 1 : vector<16x128xf32>, i32 -> vector<16x128xf32>
    %c9 = arith.constant 9 : index
    %c0_46 = arith.constant 0 : index
    %130 = vector.load %arg1[%c9, %c0_46] : memref<36x128xf32, #tpu.memory_space<vmem>>, vector<1x128xf32>
    %131 = vector.broadcast %130 : vector<1x128xf32> to vector<16x128xf32>
    %132 = arith.mulf %129, %131 : vector<16x128xf32>
    %133 = arith.addf %89, %132 : vector<16x128xf32>
    %c64_i32_47 = arith.constant 64 : i32
    %134 = tpu.dynamic_rotate %124 by %c64_i32_47 dim 1 : vector<16x128xf32>, i32 -> vector<16x128xf32>
    %c10 = arith.constant 10 : index
    %c0_48 = arith.constant 0 : index
    %135 = vector.load %arg1[%c10, %c0_48] : memref<36x128xf32, #tpu.memory_space<vmem>>, vector<1x128xf32>
    %136 = vector.broadcast %135 : vector<1x128xf32> to vector<16x128xf32>
    %137 = arith.mulf %134, %136 : vector<16x128xf32>
    %138 = arith.addf %94, %137 : vector<16x128xf32>
    %c96_i32_49 = arith.constant 96 : i32
    %139 = tpu.dynamic_rotate %124 by %c96_i32_49 dim 1 : vector<16x128xf32>, i32 -> vector<16x128xf32>
    %c11 = arith.constant 11 : index
    %c0_50 = arith.constant 0 : index
    %140 = vector.load %arg1[%c11, %c0_50] : memref<36x128xf32, #tpu.memory_space<vmem>>, vector<1x128xf32>
    %141 = vector.broadcast %140 : vector<1x128xf32> to vector<16x128xf32>
    %142 = arith.mulf %139, %141 : vector<16x128xf32>
    %143 = arith.addf %99, %142 : vector<16x128xf32>
    %c1_i32_51 = arith.constant 1 : i32
    %144 = tpu.dynamic_rotate %0 by %c1_i32_51 dim 1 : vector<16x128xf32>, i32 -> vector<16x128xf32>
    %c-1_i32_52 = arith.constant -1 : i32
    %145 = vector.broadcast %c-1_i32_52 : i32 to vector<1x128xi32>
    %146 = arith.addi %18, %145 : vector<1x128xi32>
    %c0_i32_53 = arith.constant 0 : i32
    %147 = vector.broadcast %c0_i32_53 : i32 to vector<1x128xi32>
    %148 = arith.cmpi sge, %146, %147 : vector<1x128xi32>
    %c-1_i32_54 = arith.constant -1 : i32
    %149 = vector.broadcast %c-1_i32_54 : i32 to vector<1x128xi32>
    %150 = arith.addi %18, %149 : vector<1x128xi32>
    %c15_i32_55 = arith.constant 15 : i32
    %151 = vector.broadcast %c15_i32_55 : i32 to vector<1x128xi32>
    %152 = arith.cmpi sle, %150, %151 : vector<1x128xi32>
    %153 = arith.andi %148, %152 : vector<1x128xi1>
    %cst_56 = arith.constant 0.000000e+00 : f32
    %154 = vector.shape_cast %153 : vector<1x128xi1> to vector<1x128xi1>
    %155 = vector.broadcast %154 : vector<1x128xi1> to vector<16x128xi1>
    %156 = vector.broadcast %cst_56 : f32 to vector<16x128xf32>
    %157 = arith.select %155, %144, %156 : vector<16x128xi1>, vector<16x128xf32>
    %c12 = arith.constant 12 : index
    %c0_57 = arith.constant 0 : index
    %158 = vector.load %arg1[%c12, %c0_57] : memref<36x128xf32, #tpu.memory_space<vmem>>, vector<1x128xf32>
    %159 = vector.broadcast %158 : vector<1x128xf32> to vector<16x128xf32>
    %160 = arith.mulf %157, %159 : vector<16x128xf32>
    %161 = arith.addf %128, %160 : vector<16x128xf32>
    %c32_i32_58 = arith.constant 32 : i32
    %162 = tpu.dynamic_rotate %157 by %c32_i32_58 dim 1 : vector<16x128xf32>, i32 -> vector<16x128xf32>
    %c13 = arith.constant 13 : index
    %c0_59 = arith.constant 0 : index
    %163 = vector.load %arg1[%c13, %c0_59] : memref<36x128xf32, #tpu.memory_space<vmem>>, vector<1x128xf32>
    %164 = vector.broadcast %163 : vector<1x128xf32> to vector<16x128xf32>
    %165 = arith.mulf %162, %164 : vector<16x128xf32>
    %166 = arith.addf %133, %165 : vector<16x128xf32>
    %c64_i32_60 = arith.constant 64 : i32
    %167 = tpu.dynamic_rotate %157 by %c64_i32_60 dim 1 : vector<16x128xf32>, i32 -> vector<16x128xf32>
    %c14 = arith.constant 14 : index
    %c0_61 = arith.constant 0 : index
    %168 = vector.load %arg1[%c14, %c0_61] : memref<36x128xf32, #tpu.memory_space<vmem>>, vector<1x128xf32>
    %169 = vector.broadcast %168 : vector<1x128xf32> to vector<16x128xf32>
    %170 = arith.mulf %167, %169 : vector<16x128xf32>
    %171 = arith.addf %138, %170 : vector<16x128xf32>
    %c96_i32_62 = arith.constant 96 : i32
    %172 = tpu.dynamic_rotate %157 by %c96_i32_62 dim 1 : vector<16x128xf32>, i32 -> vector<16x128xf32>
    %c15 = arith.constant 15 : index
    %c0_63 = arith.constant 0 : index
    %173 = vector.load %arg1[%c15, %c0_63] : memref<36x128xf32, #tpu.memory_space<vmem>>, vector<1x128xf32>
    %174 = vector.broadcast %173 : vector<1x128xf32> to vector<16x128xf32>
    %175 = arith.mulf %172, %174 : vector<16x128xf32>
    %176 = arith.addf %143, %175 : vector<16x128xf32>
    %c16 = arith.constant 16 : index
    %c0_64 = arith.constant 0 : index
    %177 = vector.load %arg1[%c16, %c0_64] : memref<36x128xf32, #tpu.memory_space<vmem>>, vector<1x128xf32>
    %178 = vector.broadcast %177 : vector<1x128xf32> to vector<16x128xf32>
    %179 = arith.mulf %0, %178 : vector<16x128xf32>
    %180 = arith.addf %161, %179 : vector<16x128xf32>
    %c32_i32_65 = arith.constant 32 : i32
    %181 = tpu.dynamic_rotate %0 by %c32_i32_65 dim 1 : vector<16x128xf32>, i32 -> vector<16x128xf32>
    %c17 = arith.constant 17 : index
    %c0_66 = arith.constant 0 : index
    %182 = vector.load %arg1[%c17, %c0_66] : memref<36x128xf32, #tpu.memory_space<vmem>>, vector<1x128xf32>
    %183 = vector.broadcast %182 : vector<1x128xf32> to vector<16x128xf32>
    %184 = arith.mulf %181, %183 : vector<16x128xf32>
    %185 = arith.addf %166, %184 : vector<16x128xf32>
    %c64_i32_67 = arith.constant 64 : i32
    %186 = tpu.dynamic_rotate %0 by %c64_i32_67 dim 1 : vector<16x128xf32>, i32 -> vector<16x128xf32>
    %c18 = arith.constant 18 : index
    %c0_68 = arith.constant 0 : index
    %187 = vector.load %arg1[%c18, %c0_68] : memref<36x128xf32, #tpu.memory_space<vmem>>, vector<1x128xf32>
    %188 = vector.broadcast %187 : vector<1x128xf32> to vector<16x128xf32>
    %189 = arith.mulf %186, %188 : vector<16x128xf32>
    %190 = arith.addf %171, %189 : vector<16x128xf32>
    %c96_i32_69 = arith.constant 96 : i32
    %191 = tpu.dynamic_rotate %0 by %c96_i32_69 dim 1 : vector<16x128xf32>, i32 -> vector<16x128xf32>
    %c19 = arith.constant 19 : index
    %c0_70 = arith.constant 0 : index
    %192 = vector.load %arg1[%c19, %c0_70] : memref<36x128xf32, #tpu.memory_space<vmem>>, vector<1x128xf32>
    %193 = vector.broadcast %192 : vector<1x128xf32> to vector<16x128xf32>
    %194 = arith.mulf %191, %193 : vector<16x128xf32>
    %195 = arith.addf %176, %194 : vector<16x128xf32>
    %c127_i32_71 = arith.constant 127 : i32
    %196 = tpu.dynamic_rotate %0 by %c127_i32_71 dim 1 : vector<16x128xf32>, i32 -> vector<16x128xf32>
    %c1_i32_72 = arith.constant 1 : i32
    %197 = vector.broadcast %c1_i32_72 : i32 to vector<1x128xi32>
    %198 = arith.addi %18, %197 : vector<1x128xi32>
    %c0_i32_73 = arith.constant 0 : i32
    %199 = vector.broadcast %c0_i32_73 : i32 to vector<1x128xi32>
    %200 = arith.cmpi sge, %198, %199 : vector<1x128xi32>
    %c1_i32_74 = arith.constant 1 : i32
    %201 = vector.broadcast %c1_i32_74 : i32 to vector<1x128xi32>
    %202 = arith.addi %18, %201 : vector<1x128xi32>
    %c15_i32_75 = arith.constant 15 : i32
    %203 = vector.broadcast %c15_i32_75 : i32 to vector<1x128xi32>
    %204 = arith.cmpi sle, %202, %203 : vector<1x128xi32>
    %205 = arith.andi %200, %204 : vector<1x128xi1>
    %cst_76 = arith.constant 0.000000e+00 : f32
    %206 = vector.shape_cast %205 : vector<1x128xi1> to vector<1x128xi1>
    %207 = vector.broadcast %206 : vector<1x128xi1> to vector<16x128xi1>
    %208 = vector.broadcast %cst_76 : f32 to vector<16x128xf32>
    %209 = arith.select %207, %196, %208 : vector<16x128xi1>, vector<16x128xf32>
    %c20 = arith.constant 20 : index
    %c0_77 = arith.constant 0 : index
    %210 = vector.load %arg1[%c20, %c0_77] : memref<36x128xf32, #tpu.memory_space<vmem>>, vector<1x128xf32>
    %211 = vector.broadcast %210 : vector<1x128xf32> to vector<16x128xf32>
    %212 = arith.mulf %209, %211 : vector<16x128xf32>
    %213 = arith.addf %180, %212 : vector<16x128xf32>
    %c32_i32_78 = arith.constant 32 : i32
    %214 = tpu.dynamic_rotate %209 by %c32_i32_78 dim 1 : vector<16x128xf32>, i32 -> vector<16x128xf32>
    %c21 = arith.constant 21 : index
    %c0_79 = arith.constant 0 : index
    %215 = vector.load %arg1[%c21, %c0_79] : memref<36x128xf32, #tpu.memory_space<vmem>>, vector<1x128xf32>
    %216 = vector.broadcast %215 : vector<1x128xf32> to vector<16x128xf32>
    %217 = arith.mulf %214, %216 : vector<16x128xf32>
    %218 = arith.addf %185, %217 : vector<16x128xf32>
    %c64_i32_80 = arith.constant 64 : i32
    %219 = tpu.dynamic_rotate %209 by %c64_i32_80 dim 1 : vector<16x128xf32>, i32 -> vector<16x128xf32>
    %c22 = arith.constant 22 : index
    %c0_81 = arith.constant 0 : index
    %220 = vector.load %arg1[%c22, %c0_81] : memref<36x128xf32, #tpu.memory_space<vmem>>, vector<1x128xf32>
    %221 = vector.broadcast %220 : vector<1x128xf32> to vector<16x128xf32>
    %222 = arith.mulf %219, %221 : vector<16x128xf32>
    %223 = arith.addf %190, %222 : vector<16x128xf32>
    %c96_i32_82 = arith.constant 96 : i32
    %224 = tpu.dynamic_rotate %209 by %c96_i32_82 dim 1 : vector<16x128xf32>, i32 -> vector<16x128xf32>
    %c23 = arith.constant 23 : index
    %c0_83 = arith.constant 0 : index
    %225 = vector.load %arg1[%c23, %c0_83] : memref<36x128xf32, #tpu.memory_space<vmem>>, vector<1x128xf32>
    %226 = vector.broadcast %225 : vector<1x128xf32> to vector<16x128xf32>
    %227 = arith.mulf %224, %226 : vector<16x128xf32>
    %228 = arith.addf %195, %227 : vector<16x128xf32>
    %c15_i32_84 = arith.constant 15 : i32
    %229 = tpu.dynamic_rotate %0 by %c15_i32_84 dim 0 : vector<16x128xf32>, i32 -> vector<16x128xf32>
    %c1_i32_85 = arith.constant 1 : i32
    %230 = vector.broadcast %c1_i32_85 : i32 to vector<16x1xi32>
    %231 = arith.addi %1, %230 : vector<16x1xi32>
    %c0_i32_86 = arith.constant 0 : i32
    %232 = vector.broadcast %c0_i32_86 : i32 to vector<16x1xi32>
    %233 = arith.cmpi sge, %231, %232 : vector<16x1xi32>
    %c1_i32_87 = arith.constant 1 : i32
    %234 = vector.broadcast %c1_i32_87 : i32 to vector<16x1xi32>
    %235 = arith.addi %1, %234 : vector<16x1xi32>
    %c15_i32_88 = arith.constant 15 : i32
    %236 = vector.broadcast %c15_i32_88 : i32 to vector<16x1xi32>
    %237 = arith.cmpi sle, %235, %236 : vector<16x1xi32>
    %238 = arith.andi %233, %237 : vector<16x1xi1>
    %c1_i32_89 = arith.constant 1 : i32
    %239 = tpu.dynamic_rotate %229 by %c1_i32_89 dim 1 : vector<16x128xf32>, i32 -> vector<16x128xf32>
    %c-1_i32_90 = arith.constant -1 : i32
    %240 = vector.broadcast %c-1_i32_90 : i32 to vector<1x128xi32>
    %241 = arith.addi %18, %240 : vector<1x128xi32>
    %c0_i32_91 = arith.constant 0 : i32
    %242 = vector.broadcast %c0_i32_91 : i32 to vector<1x128xi32>
    %243 = arith.cmpi sge, %241, %242 : vector<1x128xi32>
    %c-1_i32_92 = arith.constant -1 : i32
    %244 = vector.broadcast %c-1_i32_92 : i32 to vector<1x128xi32>
    %245 = arith.addi %18, %244 : vector<1x128xi32>
    %c15_i32_93 = arith.constant 15 : i32
    %246 = vector.broadcast %c15_i32_93 : i32 to vector<1x128xi32>
    %247 = arith.cmpi sle, %245, %246 : vector<1x128xi32>
    %248 = arith.andi %243, %247 : vector<1x128xi1>
    %249 = vector.broadcast %238 : vector<16x1xi1> to vector<16x128xi1>
    %250 = vector.broadcast %248 : vector<1x128xi1> to vector<16x128xi1>
    %251 = arith.andi %249, %250 : vector<16x128xi1>
    %cst_94 = arith.constant 0.000000e+00 : f32
    %252 = vector.broadcast %cst_94 : f32 to vector<16x128xf32>
    %253 = arith.select %251, %239, %252 : vector<16x128xi1>, vector<16x128xf32>
    %c24 = arith.constant 24 : index
    %c0_95 = arith.constant 0 : index
    %254 = vector.load %arg1[%c24, %c0_95] : memref<36x128xf32, #tpu.memory_space<vmem>>, vector<1x128xf32>
    %255 = vector.broadcast %254 : vector<1x128xf32> to vector<16x128xf32>
    %256 = arith.mulf %253, %255 : vector<16x128xf32>
    %257 = arith.addf %213, %256 : vector<16x128xf32>
    %c32_i32_96 = arith.constant 32 : i32
    %258 = tpu.dynamic_rotate %253 by %c32_i32_96 dim 1 : vector<16x128xf32>, i32 -> vector<16x128xf32>
    %c25 = arith.constant 25 : index
    %c0_97 = arith.constant 0 : index
    %259 = vector.load %arg1[%c25, %c0_97] : memref<36x128xf32, #tpu.memory_space<vmem>>, vector<1x128xf32>
    %260 = vector.broadcast %259 : vector<1x128xf32> to vector<16x128xf32>
    %261 = arith.mulf %258, %260 : vector<16x128xf32>
    %262 = arith.addf %218, %261 : vector<16x128xf32>
    %c64_i32_98 = arith.constant 64 : i32
    %263 = tpu.dynamic_rotate %253 by %c64_i32_98 dim 1 : vector<16x128xf32>, i32 -> vector<16x128xf32>
    %c26 = arith.constant 26 : index
    %c0_99 = arith.constant 0 : index
    %264 = vector.load %arg1[%c26, %c0_99] : memref<36x128xf32, #tpu.memory_space<vmem>>, vector<1x128xf32>
    %265 = vector.broadcast %264 : vector<1x128xf32> to vector<16x128xf32>
    %266 = arith.mulf %263, %265 : vector<16x128xf32>
    %267 = arith.addf %223, %266 : vector<16x128xf32>
    %c96_i32_100 = arith.constant 96 : i32
    %268 = tpu.dynamic_rotate %253 by %c96_i32_100 dim 1 : vector<16x128xf32>, i32 -> vector<16x128xf32>
    %c27 = arith.constant 27 : index
    %c0_101 = arith.constant 0 : index
    %269 = vector.load %arg1[%c27, %c0_101] : memref<36x128xf32, #tpu.memory_space<vmem>>, vector<1x128xf32>
    %270 = vector.broadcast %269 : vector<1x128xf32> to vector<16x128xf32>
    %271 = arith.mulf %268, %270 : vector<16x128xf32>
    %272 = arith.addf %228, %271 : vector<16x128xf32>
    %c15_i32_102 = arith.constant 15 : i32
    %273 = tpu.dynamic_rotate %0 by %c15_i32_102 dim 0 : vector<16x128xf32>, i32 -> vector<16x128xf32>
    %c1_i32_103 = arith.constant 1 : i32
    %274 = vector.broadcast %c1_i32_103 : i32 to vector<16x1xi32>
    %275 = arith.addi %1, %274 : vector<16x1xi32>
    %c0_i32_104 = arith.constant 0 : i32
    %276 = vector.broadcast %c0_i32_104 : i32 to vector<16x1xi32>
    %277 = arith.cmpi sge, %275, %276 : vector<16x1xi32>
    %c1_i32_105 = arith.constant 1 : i32
    %278 = vector.broadcast %c1_i32_105 : i32 to vector<16x1xi32>
    %279 = arith.addi %1, %278 : vector<16x1xi32>
    %c15_i32_106 = arith.constant 15 : i32
    %280 = vector.broadcast %c15_i32_106 : i32 to vector<16x1xi32>
    %281 = arith.cmpi sle, %279, %280 : vector<16x1xi32>
    %282 = arith.andi %277, %281 : vector<16x1xi1>
    %cst_107 = arith.constant 0.000000e+00 : f32
    %283 = vector.shape_cast %282 : vector<16x1xi1> to vector<16x1xi1>
    %284 = vector.broadcast %283 : vector<16x1xi1> to vector<16x128xi1>
    %285 = vector.broadcast %cst_107 : f32 to vector<16x128xf32>
    %286 = arith.select %284, %273, %285 : vector<16x128xi1>, vector<16x128xf32>
    %c28 = arith.constant 28 : index
    %c0_108 = arith.constant 0 : index
    %287 = vector.load %arg1[%c28, %c0_108] : memref<36x128xf32, #tpu.memory_space<vmem>>, vector<1x128xf32>
    %288 = vector.broadcast %287 : vector<1x128xf32> to vector<16x128xf32>
    %289 = arith.mulf %286, %288 : vector<16x128xf32>
    %290 = arith.addf %257, %289 : vector<16x128xf32>
    %c32_i32_109 = arith.constant 32 : i32
    %291 = tpu.dynamic_rotate %286 by %c32_i32_109 dim 1 : vector<16x128xf32>, i32 -> vector<16x128xf32>
    %c29 = arith.constant 29 : index
    %c0_110 = arith.constant 0 : index
    %292 = vector.load %arg1[%c29, %c0_110] : memref<36x128xf32, #tpu.memory_space<vmem>>, vector<1x128xf32>
    %293 = vector.broadcast %292 : vector<1x128xf32> to vector<16x128xf32>
    %294 = arith.mulf %291, %293 : vector<16x128xf32>
    %295 = arith.addf %262, %294 : vector<16x128xf32>
    %c64_i32_111 = arith.constant 64 : i32
    %296 = tpu.dynamic_rotate %286 by %c64_i32_111 dim 1 : vector<16x128xf32>, i32 -> vector<16x128xf32>
    %c30 = arith.constant 30 : index
    %c0_112 = arith.constant 0 : index
    %297 = vector.load %arg1[%c30, %c0_112] : memref<36x128xf32, #tpu.memory_space<vmem>>, vector<1x128xf32>
    %298 = vector.broadcast %297 : vector<1x128xf32> to vector<16x128xf32>
    %299 = arith.mulf %296, %298 : vector<16x128xf32>
    %300 = arith.addf %267, %299 : vector<16x128xf32>
    %c96_i32_113 = arith.constant 96 : i32
    %301 = tpu.dynamic_rotate %286 by %c96_i32_113 dim 1 : vector<16x128xf32>, i32 -> vector<16x128xf32>
    %c31 = arith.constant 31 : index
    %c0_114 = arith.constant 0 : index
    %302 = vector.load %arg1[%c31, %c0_114] : memref<36x128xf32, #tpu.memory_space<vmem>>, vector<1x128xf32>
    %303 = vector.broadcast %302 : vector<1x128xf32> to vector<16x128xf32>
    %304 = arith.mulf %301, %303 : vector<16x128xf32>
    %305 = arith.addf %272, %304 : vector<16x128xf32>
    %c15_i32_115 = arith.constant 15 : i32
    %306 = tpu.dynamic_rotate %0 by %c15_i32_115 dim 0 : vector<16x128xf32>, i32 -> vector<16x128xf32>
    %c1_i32_116 = arith.constant 1 : i32
    %307 = vector.broadcast %c1_i32_116 : i32 to vector<16x1xi32>
    %308 = arith.addi %1, %307 : vector<16x1xi32>
    %c0_i32_117 = arith.constant 0 : i32
    %309 = vector.broadcast %c0_i32_117 : i32 to vector<16x1xi32>
    %310 = arith.cmpi sge, %308, %309 : vector<16x1xi32>
    %c1_i32_118 = arith.constant 1 : i32
    %311 = vector.broadcast %c1_i32_118 : i32 to vector<16x1xi32>
    %312 = arith.addi %1, %311 : vector<16x1xi32>
    %c15_i32_119 = arith.constant 15 : i32
    %313 = vector.broadcast %c15_i32_119 : i32 to vector<16x1xi32>
    %314 = arith.cmpi sle, %312, %313 : vector<16x1xi32>
    %315 = arith.andi %310, %314 : vector<16x1xi1>
    %c127_i32_120 = arith.constant 127 : i32
    %316 = tpu.dynamic_rotate %306 by %c127_i32_120 dim 1 : vector<16x128xf32>, i32 -> vector<16x128xf32>
    %c1_i32_121 = arith.constant 1 : i32
    %317 = vector.broadcast %c1_i32_121 : i32 to vector<1x128xi32>
    %318 = arith.addi %18, %317 : vector<1x128xi32>
    %c0_i32_122 = arith.constant 0 : i32
    %319 = vector.broadcast %c0_i32_122 : i32 to vector<1x128xi32>
    %320 = arith.cmpi sge, %318, %319 : vector<1x128xi32>
    %c1_i32_123 = arith.constant 1 : i32
    %321 = vector.broadcast %c1_i32_123 : i32 to vector<1x128xi32>
    %322 = arith.addi %18, %321 : vector<1x128xi32>
    %c15_i32_124 = arith.constant 15 : i32
    %323 = vector.broadcast %c15_i32_124 : i32 to vector<1x128xi32>
    %324 = arith.cmpi sle, %322, %323 : vector<1x128xi32>
    %325 = arith.andi %320, %324 : vector<1x128xi1>
    %326 = vector.broadcast %315 : vector<16x1xi1> to vector<16x128xi1>
    %327 = vector.broadcast %325 : vector<1x128xi1> to vector<16x128xi1>
    %328 = arith.andi %326, %327 : vector<16x128xi1>
    %cst_125 = arith.constant 0.000000e+00 : f32
    %329 = vector.broadcast %cst_125 : f32 to vector<16x128xf32>
    %330 = arith.select %328, %316, %329 : vector<16x128xi1>, vector<16x128xf32>
    %c32 = arith.constant 32 : index
    %c0_126 = arith.constant 0 : index
    %331 = vector.load %arg1[%c32, %c0_126] : memref<36x128xf32, #tpu.memory_space<vmem>>, vector<1x128xf32>
    %332 = vector.broadcast %331 : vector<1x128xf32> to vector<16x128xf32>
    %333 = arith.mulf %330, %332 : vector<16x128xf32>
    %334 = arith.addf %290, %333 : vector<16x128xf32>
    %c32_i32_127 = arith.constant 32 : i32
    %335 = tpu.dynamic_rotate %330 by %c32_i32_127 dim 1 : vector<16x128xf32>, i32 -> vector<16x128xf32>
    %c33 = arith.constant 33 : index
    %c0_128 = arith.constant 0 : index
    %336 = vector.load %arg1[%c33, %c0_128] : memref<36x128xf32, #tpu.memory_space<vmem>>, vector<1x128xf32>
    %337 = vector.broadcast %336 : vector<1x128xf32> to vector<16x128xf32>
    %338 = arith.mulf %335, %337 : vector<16x128xf32>
    %339 = arith.addf %295, %338 : vector<16x128xf32>
    %c64_i32_129 = arith.constant 64 : i32
    %340 = tpu.dynamic_rotate %330 by %c64_i32_129 dim 1 : vector<16x128xf32>, i32 -> vector<16x128xf32>
    %c34 = arith.constant 34 : index
    %c0_130 = arith.constant 0 : index
    %341 = vector.load %arg1[%c34, %c0_130] : memref<36x128xf32, #tpu.memory_space<vmem>>, vector<1x128xf32>
    %342 = vector.broadcast %341 : vector<1x128xf32> to vector<16x128xf32>
    %343 = arith.mulf %340, %342 : vector<16x128xf32>
    %344 = arith.addf %300, %343 : vector<16x128xf32>
    %c96_i32_131 = arith.constant 96 : i32
    %345 = tpu.dynamic_rotate %330 by %c96_i32_131 dim 1 : vector<16x128xf32>, i32 -> vector<16x128xf32>
    %c35 = arith.constant 35 : index
    %c0_132 = arith.constant 0 : index
    %346 = vector.load %arg1[%c35, %c0_132] : memref<36x128xf32, #tpu.memory_space<vmem>>, vector<1x128xf32>
    %347 = vector.broadcast %346 : vector<1x128xf32> to vector<16x128xf32>
    %348 = arith.mulf %345, %347 : vector<16x128xf32>
    %349 = arith.addf %305, %348 : vector<16x128xf32>
    %350 = arith.addf %334, %339 : vector<16x128xf32>
    %351 = arith.addf %350, %344 : vector<16x128xf32>
    %352 = arith.addf %351, %349 : vector<16x128xf32>
    %cst_133 = arith.constant dense<0.000000e+00> : vector<128xf32>
    %353 = vector.multi_reduction <add>, %352, %cst_133 [0] : vector<16x128xf32> to vector<128xf32>
    %354 = vector.shape_cast %353 : vector<128xf32> to vector<1x128xf32>
    %355 = arith.mulf %352, %352 : vector<16x128xf32>
    %cst_134 = arith.constant dense<0.000000e+00> : vector<128xf32>
    %356 = vector.multi_reduction <add>, %355, %cst_134 [0] : vector<16x128xf32> to vector<128xf32>
    %357 = vector.shape_cast %356 : vector<128xf32> to vector<1x128xf32>
    %c0_135 = arith.constant 0 : index
    %c0_136 = arith.constant 0 : index
    %358 = vector.load %arg5[%c0_135, %c0_136] : memref<128x128xf32, #tpu.memory_space<vmem>>, vector<128x128xf32>
    %cst_137 = arith.constant dense<0.000000e+00> : vector<1x128xf32>
    %359 = tpu.matmul %354, %358, %cst_137 {dimension_numbers = #tpu.dot_dimension_numbers<[1], [0], [0], [1], [0, 0, 1, 1], [], []>} : vector<1x128xf32>, vector<128x128xf32>, vector<1x128xf32> -> vector<1x128xf32>
    %cst_138 = arith.constant 0.001953125 : f32
    %360 = vector.broadcast %cst_138 : f32 to vector<1x128xf32>
    %361 = arith.mulf %359, %360 : vector<1x128xf32>
    %c0_139 = arith.constant 0 : index
    %c0_140 = arith.constant 0 : index
    %362 = vector.load %arg5[%c0_139, %c0_140] : memref<128x128xf32, #tpu.memory_space<vmem>>, vector<128x128xf32>
    %cst_141 = arith.constant dense<0.000000e+00> : vector<1x128xf32>
    %363 = tpu.matmul %357, %362, %cst_141 {dimension_numbers = #tpu.dot_dimension_numbers<[1], [0], [0], [1], [0, 0, 1, 1], [], []>} : vector<1x128xf32>, vector<128x128xf32>, vector<1x128xf32> -> vector<1x128xf32>
    %cst_142 = arith.constant 0.001953125 : f32
    %364 = vector.broadcast %cst_142 : f32 to vector<1x128xf32>
    %365 = arith.mulf %363, %364 : vector<1x128xf32>
    %366 = arith.mulf %361, %361 : vector<1x128xf32>
    %367 = arith.subf %365, %366 : vector<1x128xf32>
    %cst_143 = arith.constant 9.99999974E-6 : f32
    %368 = vector.broadcast %cst_143 : f32 to vector<1x128xf32>
    %369 = arith.addf %367, %368 : vector<1x128xf32>
    %370 = math.rsqrt %369 : vector<1x128xf32>
    %c0_144 = arith.constant 0 : index
    %c0_145 = arith.constant 0 : index
    %371 = vector.load %arg3[%c0_144, %c0_145] : memref<2x128xf32, #tpu.memory_space<vmem>>, vector<1x128xf32>
    %c1_146 = arith.constant 1 : index
    %c0_147 = arith.constant 0 : index
    %372 = vector.load %arg3[%c1_146, %c0_147] : memref<2x128xf32, #tpu.memory_space<vmem>>, vector<1x128xf32>
    %373 = vector.broadcast %361 : vector<1x128xf32> to vector<16x128xf32>
    %374 = arith.subf %352, %373 : vector<16x128xf32>
    %375 = arith.mulf %370, %371 : vector<1x128xf32>
    %376 = vector.broadcast %375 : vector<1x128xf32> to vector<16x128xf32>
    %377 = arith.mulf %374, %376 : vector<16x128xf32>
    %378 = vector.broadcast %372 : vector<1x128xf32> to vector<16x128xf32>
    %379 = arith.addf %377, %378 : vector<16x128xf32>
    %cst_148 = arith.constant 0.000000e+00 : f32
    %380 = vector.broadcast %cst_148 : f32 to vector<16x128xf32>
    %381 = arith.maximumf %379, %380 : vector<16x128xf32>
    %cst_149 = arith.constant 0.000000e+00 : f32
    %382 = vector.broadcast %cst_149 : f32 to vector<16x128xf32>
    %cst_150 = arith.constant 0.000000e+00 : f32
    %383 = vector.broadcast %cst_150 : f32 to vector<16x128xf32>
    %cst_151 = arith.constant 0.000000e+00 : f32
    %384 = vector.broadcast %cst_151 : f32 to vector<16x128xf32>
    %cst_152 = arith.constant 0.000000e+00 : f32
    %385 = vector.broadcast %cst_152 : f32 to vector<16x128xf32>
    %c1_i32_153 = arith.constant 1 : i32
    %386 = tpu.dynamic_rotate %381 by %c1_i32_153 dim 0 : vector<16x128xf32>, i32 -> vector<16x128xf32>
    %c-1_i32_154 = arith.constant -1 : i32
    %387 = vector.broadcast %c-1_i32_154 : i32 to vector<16x1xi32>
    %388 = arith.addi %1, %387 : vector<16x1xi32>
    %c0_i32_155 = arith.constant 0 : i32
    %389 = vector.broadcast %c0_i32_155 : i32 to vector<16x1xi32>
    %390 = arith.cmpi sge, %388, %389 : vector<16x1xi32>
    %c-1_i32_156 = arith.constant -1 : i32
    %391 = vector.broadcast %c-1_i32_156 : i32 to vector<16x1xi32>
    %392 = arith.addi %1, %391 : vector<16x1xi32>
    %c15_i32_157 = arith.constant 15 : i32
    %393 = vector.broadcast %c15_i32_157 : i32 to vector<16x1xi32>
    %394 = arith.cmpi sle, %392, %393 : vector<16x1xi32>
    %395 = arith.andi %390, %394 : vector<16x1xi1>
    %c1_i32_158 = arith.constant 1 : i32
    %396 = tpu.dynamic_rotate %386 by %c1_i32_158 dim 1 : vector<16x128xf32>, i32 -> vector<16x128xf32>
    %c-1_i32_159 = arith.constant -1 : i32
    %397 = vector.broadcast %c-1_i32_159 : i32 to vector<1x128xi32>
    %398 = arith.addi %18, %397 : vector<1x128xi32>
    %c0_i32_160 = arith.constant 0 : i32
    %399 = vector.broadcast %c0_i32_160 : i32 to vector<1x128xi32>
    %400 = arith.cmpi sge, %398, %399 : vector<1x128xi32>
    %c-1_i32_161 = arith.constant -1 : i32
    %401 = vector.broadcast %c-1_i32_161 : i32 to vector<1x128xi32>
    %402 = arith.addi %18, %401 : vector<1x128xi32>
    %c15_i32_162 = arith.constant 15 : i32
    %403 = vector.broadcast %c15_i32_162 : i32 to vector<1x128xi32>
    %404 = arith.cmpi sle, %402, %403 : vector<1x128xi32>
    %405 = arith.andi %400, %404 : vector<1x128xi1>
    %406 = vector.broadcast %395 : vector<16x1xi1> to vector<16x128xi1>
    %407 = vector.broadcast %405 : vector<1x128xi1> to vector<16x128xi1>
    %408 = arith.andi %406, %407 : vector<16x128xi1>
    %cst_163 = arith.constant 0.000000e+00 : f32
    %409 = vector.broadcast %cst_163 : f32 to vector<16x128xf32>
    %410 = arith.select %408, %396, %409 : vector<16x128xi1>, vector<16x128xf32>
    %c0_164 = arith.constant 0 : index
    %c0_165 = arith.constant 0 : index
    %411 = vector.load %arg2[%c0_164, %c0_165] : memref<36x128xf32, #tpu.memory_space<vmem>>, vector<1x128xf32>
    %412 = vector.broadcast %411 : vector<1x128xf32> to vector<16x128xf32>
    %413 = arith.mulf %410, %412 : vector<16x128xf32>
    %414 = arith.addf %382, %413 : vector<16x128xf32>
    %c32_i32_166 = arith.constant 32 : i32
    %415 = tpu.dynamic_rotate %410 by %c32_i32_166 dim 1 : vector<16x128xf32>, i32 -> vector<16x128xf32>
    %c1_167 = arith.constant 1 : index
    %c0_168 = arith.constant 0 : index
    %416 = vector.load %arg2[%c1_167, %c0_168] : memref<36x128xf32, #tpu.memory_space<vmem>>, vector<1x128xf32>
    %417 = vector.broadcast %416 : vector<1x128xf32> to vector<16x128xf32>
    %418 = arith.mulf %415, %417 : vector<16x128xf32>
    %419 = arith.addf %383, %418 : vector<16x128xf32>
    %c64_i32_169 = arith.constant 64 : i32
    %420 = tpu.dynamic_rotate %410 by %c64_i32_169 dim 1 : vector<16x128xf32>, i32 -> vector<16x128xf32>
    %c2_170 = arith.constant 2 : index
    %c0_171 = arith.constant 0 : index
    %421 = vector.load %arg2[%c2_170, %c0_171] : memref<36x128xf32, #tpu.memory_space<vmem>>, vector<1x128xf32>
    %422 = vector.broadcast %421 : vector<1x128xf32> to vector<16x128xf32>
    %423 = arith.mulf %420, %422 : vector<16x128xf32>
    %424 = arith.addf %384, %423 : vector<16x128xf32>
    %c96_i32_172 = arith.constant 96 : i32
    %425 = tpu.dynamic_rotate %410 by %c96_i32_172 dim 1 : vector<16x128xf32>, i32 -> vector<16x128xf32>
    %c3_173 = arith.constant 3 : index
    %c0_174 = arith.constant 0 : index
    %426 = vector.load %arg2[%c3_173, %c0_174] : memref<36x128xf32, #tpu.memory_space<vmem>>, vector<1x128xf32>
    %427 = vector.broadcast %426 : vector<1x128xf32> to vector<16x128xf32>
    %428 = arith.mulf %425, %427 : vector<16x128xf32>
    %429 = arith.addf %385, %428 : vector<16x128xf32>
    %c1_i32_175 = arith.constant 1 : i32
    %430 = tpu.dynamic_rotate %381 by %c1_i32_175 dim 0 : vector<16x128xf32>, i32 -> vector<16x128xf32>
    %c-1_i32_176 = arith.constant -1 : i32
    %431 = vector.broadcast %c-1_i32_176 : i32 to vector<16x1xi32>
    %432 = arith.addi %1, %431 : vector<16x1xi32>
    %c0_i32_177 = arith.constant 0 : i32
    %433 = vector.broadcast %c0_i32_177 : i32 to vector<16x1xi32>
    %434 = arith.cmpi sge, %432, %433 : vector<16x1xi32>
    %c-1_i32_178 = arith.constant -1 : i32
    %435 = vector.broadcast %c-1_i32_178 : i32 to vector<16x1xi32>
    %436 = arith.addi %1, %435 : vector<16x1xi32>
    %c15_i32_179 = arith.constant 15 : i32
    %437 = vector.broadcast %c15_i32_179 : i32 to vector<16x1xi32>
    %438 = arith.cmpi sle, %436, %437 : vector<16x1xi32>
    %439 = arith.andi %434, %438 : vector<16x1xi1>
    %cst_180 = arith.constant 0.000000e+00 : f32
    %440 = vector.shape_cast %439 : vector<16x1xi1> to vector<16x1xi1>
    %441 = vector.broadcast %440 : vector<16x1xi1> to vector<16x128xi1>
    %442 = vector.broadcast %cst_180 : f32 to vector<16x128xf32>
    %443 = arith.select %441, %430, %442 : vector<16x128xi1>, vector<16x128xf32>
    %c4_181 = arith.constant 4 : index
    %c0_182 = arith.constant 0 : index
    %444 = vector.load %arg2[%c4_181, %c0_182] : memref<36x128xf32, #tpu.memory_space<vmem>>, vector<1x128xf32>
    %445 = vector.broadcast %444 : vector<1x128xf32> to vector<16x128xf32>
    %446 = arith.mulf %443, %445 : vector<16x128xf32>
    %447 = arith.addf %414, %446 : vector<16x128xf32>
    %c32_i32_183 = arith.constant 32 : i32
    %448 = tpu.dynamic_rotate %443 by %c32_i32_183 dim 1 : vector<16x128xf32>, i32 -> vector<16x128xf32>
    %c5_184 = arith.constant 5 : index
    %c0_185 = arith.constant 0 : index
    %449 = vector.load %arg2[%c5_184, %c0_185] : memref<36x128xf32, #tpu.memory_space<vmem>>, vector<1x128xf32>
    %450 = vector.broadcast %449 : vector<1x128xf32> to vector<16x128xf32>
    %451 = arith.mulf %448, %450 : vector<16x128xf32>
    %452 = arith.addf %419, %451 : vector<16x128xf32>
    %c64_i32_186 = arith.constant 64 : i32
    %453 = tpu.dynamic_rotate %443 by %c64_i32_186 dim 1 : vector<16x128xf32>, i32 -> vector<16x128xf32>
    %c6_187 = arith.constant 6 : index
    %c0_188 = arith.constant 0 : index
    %454 = vector.load %arg2[%c6_187, %c0_188] : memref<36x128xf32, #tpu.memory_space<vmem>>, vector<1x128xf32>
    %455 = vector.broadcast %454 : vector<1x128xf32> to vector<16x128xf32>
    %456 = arith.mulf %453, %455 : vector<16x128xf32>
    %457 = arith.addf %424, %456 : vector<16x128xf32>
    %c96_i32_189 = arith.constant 96 : i32
    %458 = tpu.dynamic_rotate %443 by %c96_i32_189 dim 1 : vector<16x128xf32>, i32 -> vector<16x128xf32>
    %c7_190 = arith.constant 7 : index
    %c0_191 = arith.constant 0 : index
    %459 = vector.load %arg2[%c7_190, %c0_191] : memref<36x128xf32, #tpu.memory_space<vmem>>, vector<1x128xf32>
    %460 = vector.broadcast %459 : vector<1x128xf32> to vector<16x128xf32>
    %461 = arith.mulf %458, %460 : vector<16x128xf32>
    %462 = arith.addf %429, %461 : vector<16x128xf32>
    %c1_i32_192 = arith.constant 1 : i32
    %463 = tpu.dynamic_rotate %381 by %c1_i32_192 dim 0 : vector<16x128xf32>, i32 -> vector<16x128xf32>
    %c-1_i32_193 = arith.constant -1 : i32
    %464 = vector.broadcast %c-1_i32_193 : i32 to vector<16x1xi32>
    %465 = arith.addi %1, %464 : vector<16x1xi32>
    %c0_i32_194 = arith.constant 0 : i32
    %466 = vector.broadcast %c0_i32_194 : i32 to vector<16x1xi32>
    %467 = arith.cmpi sge, %465, %466 : vector<16x1xi32>
    %c-1_i32_195 = arith.constant -1 : i32
    %468 = vector.broadcast %c-1_i32_195 : i32 to vector<16x1xi32>
    %469 = arith.addi %1, %468 : vector<16x1xi32>
    %c15_i32_196 = arith.constant 15 : i32
    %470 = vector.broadcast %c15_i32_196 : i32 to vector<16x1xi32>
    %471 = arith.cmpi sle, %469, %470 : vector<16x1xi32>
    %472 = arith.andi %467, %471 : vector<16x1xi1>
    %c127_i32_197 = arith.constant 127 : i32
    %473 = tpu.dynamic_rotate %463 by %c127_i32_197 dim 1 : vector<16x128xf32>, i32 -> vector<16x128xf32>
    %c1_i32_198 = arith.constant 1 : i32
    %474 = vector.broadcast %c1_i32_198 : i32 to vector<1x128xi32>
    %475 = arith.addi %18, %474 : vector<1x128xi32>
    %c0_i32_199 = arith.constant 0 : i32
    %476 = vector.broadcast %c0_i32_199 : i32 to vector<1x128xi32>
    %477 = arith.cmpi sge, %475, %476 : vector<1x128xi32>
    %c1_i32_200 = arith.constant 1 : i32
    %478 = vector.broadcast %c1_i32_200 : i32 to vector<1x128xi32>
    %479 = arith.addi %18, %478 : vector<1x128xi32>
    %c15_i32_201 = arith.constant 15 : i32
    %480 = vector.broadcast %c15_i32_201 : i32 to vector<1x128xi32>
    %481 = arith.cmpi sle, %479, %480 : vector<1x128xi32>
    %482 = arith.andi %477, %481 : vector<1x128xi1>
    %483 = vector.broadcast %472 : vector<16x1xi1> to vector<16x128xi1>
    %484 = vector.broadcast %482 : vector<1x128xi1> to vector<16x128xi1>
    %485 = arith.andi %483, %484 : vector<16x128xi1>
    %cst_202 = arith.constant 0.000000e+00 : f32
    %486 = vector.broadcast %cst_202 : f32 to vector<16x128xf32>
    %487 = arith.select %485, %473, %486 : vector<16x128xi1>, vector<16x128xf32>
    %c8_203 = arith.constant 8 : index
    %c0_204 = arith.constant 0 : index
    %488 = vector.load %arg2[%c8_203, %c0_204] : memref<36x128xf32, #tpu.memory_space<vmem>>, vector<1x128xf32>
    %489 = vector.broadcast %488 : vector<1x128xf32> to vector<16x128xf32>
    %490 = arith.mulf %487, %489 : vector<16x128xf32>
    %491 = arith.addf %447, %490 : vector<16x128xf32>
    %c32_i32_205 = arith.constant 32 : i32
    %492 = tpu.dynamic_rotate %487 by %c32_i32_205 dim 1 : vector<16x128xf32>, i32 -> vector<16x128xf32>
    %c9_206 = arith.constant 9 : index
    %c0_207 = arith.constant 0 : index
    %493 = vector.load %arg2[%c9_206, %c0_207] : memref<36x128xf32, #tpu.memory_space<vmem>>, vector<1x128xf32>
    %494 = vector.broadcast %493 : vector<1x128xf32> to vector<16x128xf32>
    %495 = arith.mulf %492, %494 : vector<16x128xf32>
    %496 = arith.addf %452, %495 : vector<16x128xf32>
    %c64_i32_208 = arith.constant 64 : i32
    %497 = tpu.dynamic_rotate %487 by %c64_i32_208 dim 1 : vector<16x128xf32>, i32 -> vector<16x128xf32>
    %c10_209 = arith.constant 10 : index
    %c0_210 = arith.constant 0 : index
    %498 = vector.load %arg2[%c10_209, %c0_210] : memref<36x128xf32, #tpu.memory_space<vmem>>, vector<1x128xf32>
    %499 = vector.broadcast %498 : vector<1x128xf32> to vector<16x128xf32>
    %500 = arith.mulf %497, %499 : vector<16x128xf32>
    %501 = arith.addf %457, %500 : vector<16x128xf32>
    %c96_i32_211 = arith.constant 96 : i32
    %502 = tpu.dynamic_rotate %487 by %c96_i32_211 dim 1 : vector<16x128xf32>, i32 -> vector<16x128xf32>
    %c11_212 = arith.constant 11 : index
    %c0_213 = arith.constant 0 : index
    %503 = vector.load %arg2[%c11_212, %c0_213] : memref<36x128xf32, #tpu.memory_space<vmem>>, vector<1x128xf32>
    %504 = vector.broadcast %503 : vector<1x128xf32> to vector<16x128xf32>
    %505 = arith.mulf %502, %504 : vector<16x128xf32>
    %506 = arith.addf %462, %505 : vector<16x128xf32>
    %c1_i32_214 = arith.constant 1 : i32
    %507 = tpu.dynamic_rotate %381 by %c1_i32_214 dim 1 : vector<16x128xf32>, i32 -> vector<16x128xf32>
    %c-1_i32_215 = arith.constant -1 : i32
    %508 = vector.broadcast %c-1_i32_215 : i32 to vector<1x128xi32>
    %509 = arith.addi %18, %508 : vector<1x128xi32>
    %c0_i32_216 = arith.constant 0 : i32
    %510 = vector.broadcast %c0_i32_216 : i32 to vector<1x128xi32>
    %511 = arith.cmpi sge, %509, %510 : vector<1x128xi32>
    %c-1_i32_217 = arith.constant -1 : i32
    %512 = vector.broadcast %c-1_i32_217 : i32 to vector<1x128xi32>
    %513 = arith.addi %18, %512 : vector<1x128xi32>
    %c15_i32_218 = arith.constant 15 : i32
    %514 = vector.broadcast %c15_i32_218 : i32 to vector<1x128xi32>
    %515 = arith.cmpi sle, %513, %514 : vector<1x128xi32>
    %516 = arith.andi %511, %515 : vector<1x128xi1>
    %cst_219 = arith.constant 0.000000e+00 : f32
    %517 = vector.shape_cast %516 : vector<1x128xi1> to vector<1x128xi1>
    %518 = vector.broadcast %517 : vector<1x128xi1> to vector<16x128xi1>
    %519 = vector.broadcast %cst_219 : f32 to vector<16x128xf32>
    %520 = arith.select %518, %507, %519 : vector<16x128xi1>, vector<16x128xf32>
    %c12_220 = arith.constant 12 : index
    %c0_221 = arith.constant 0 : index
    %521 = vector.load %arg2[%c12_220, %c0_221] : memref<36x128xf32, #tpu.memory_space<vmem>>, vector<1x128xf32>
    %522 = vector.broadcast %521 : vector<1x128xf32> to vector<16x128xf32>
    %523 = arith.mulf %520, %522 : vector<16x128xf32>
    %524 = arith.addf %491, %523 : vector<16x128xf32>
    %c32_i32_222 = arith.constant 32 : i32
    %525 = tpu.dynamic_rotate %520 by %c32_i32_222 dim 1 : vector<16x128xf32>, i32 -> vector<16x128xf32>
    %c13_223 = arith.constant 13 : index
    %c0_224 = arith.constant 0 : index
    %526 = vector.load %arg2[%c13_223, %c0_224] : memref<36x128xf32, #tpu.memory_space<vmem>>, vector<1x128xf32>
    %527 = vector.broadcast %526 : vector<1x128xf32> to vector<16x128xf32>
    %528 = arith.mulf %525, %527 : vector<16x128xf32>
    %529 = arith.addf %496, %528 : vector<16x128xf32>
    %c64_i32_225 = arith.constant 64 : i32
    %530 = tpu.dynamic_rotate %520 by %c64_i32_225 dim 1 : vector<16x128xf32>, i32 -> vector<16x128xf32>
    %c14_226 = arith.constant 14 : index
    %c0_227 = arith.constant 0 : index
    %531 = vector.load %arg2[%c14_226, %c0_227] : memref<36x128xf32, #tpu.memory_space<vmem>>, vector<1x128xf32>
    %532 = vector.broadcast %531 : vector<1x128xf32> to vector<16x128xf32>
    %533 = arith.mulf %530, %532 : vector<16x128xf32>
    %534 = arith.addf %501, %533 : vector<16x128xf32>
    %c96_i32_228 = arith.constant 96 : i32
    %535 = tpu.dynamic_rotate %520 by %c96_i32_228 dim 1 : vector<16x128xf32>, i32 -> vector<16x128xf32>
    %c15_229 = arith.constant 15 : index
    %c0_230 = arith.constant 0 : index
    %536 = vector.load %arg2[%c15_229, %c0_230] : memref<36x128xf32, #tpu.memory_space<vmem>>, vector<1x128xf32>
    %537 = vector.broadcast %536 : vector<1x128xf32> to vector<16x128xf32>
    %538 = arith.mulf %535, %537 : vector<16x128xf32>
    %539 = arith.addf %506, %538 : vector<16x128xf32>
    %c16_231 = arith.constant 16 : index
    %c0_232 = arith.constant 0 : index
    %540 = vector.load %arg2[%c16_231, %c0_232] : memref<36x128xf32, #tpu.memory_space<vmem>>, vector<1x128xf32>
    %541 = vector.broadcast %540 : vector<1x128xf32> to vector<16x128xf32>
    %542 = arith.mulf %381, %541 : vector<16x128xf32>
    %543 = arith.addf %524, %542 : vector<16x128xf32>
    %c32_i32_233 = arith.constant 32 : i32
    %544 = tpu.dynamic_rotate %381 by %c32_i32_233 dim 1 : vector<16x128xf32>, i32 -> vector<16x128xf32>
    %c17_234 = arith.constant 17 : index
    %c0_235 = arith.constant 0 : index
    %545 = vector.load %arg2[%c17_234, %c0_235] : memref<36x128xf32, #tpu.memory_space<vmem>>, vector<1x128xf32>
    %546 = vector.broadcast %545 : vector<1x128xf32> to vector<16x128xf32>
    %547 = arith.mulf %544, %546 : vector<16x128xf32>
    %548 = arith.addf %529, %547 : vector<16x128xf32>
    %c64_i32_236 = arith.constant 64 : i32
    %549 = tpu.dynamic_rotate %381 by %c64_i32_236 dim 1 : vector<16x128xf32>, i32 -> vector<16x128xf32>
    %c18_237 = arith.constant 18 : index
    %c0_238 = arith.constant 0 : index
    %550 = vector.load %arg2[%c18_237, %c0_238] : memref<36x128xf32, #tpu.memory_space<vmem>>, vector<1x128xf32>
    %551 = vector.broadcast %550 : vector<1x128xf32> to vector<16x128xf32>
    %552 = arith.mulf %549, %551 : vector<16x128xf32>
    %553 = arith.addf %534, %552 : vector<16x128xf32>
    %c96_i32_239 = arith.constant 96 : i32
    %554 = tpu.dynamic_rotate %381 by %c96_i32_239 dim 1 : vector<16x128xf32>, i32 -> vector<16x128xf32>
    %c19_240 = arith.constant 19 : index
    %c0_241 = arith.constant 0 : index
    %555 = vector.load %arg2[%c19_240, %c0_241] : memref<36x128xf32, #tpu.memory_space<vmem>>, vector<1x128xf32>
    %556 = vector.broadcast %555 : vector<1x128xf32> to vector<16x128xf32>
    %557 = arith.mulf %554, %556 : vector<16x128xf32>
    %558 = arith.addf %539, %557 : vector<16x128xf32>
    %c127_i32_242 = arith.constant 127 : i32
    %559 = tpu.dynamic_rotate %381 by %c127_i32_242 dim 1 : vector<16x128xf32>, i32 -> vector<16x128xf32>
    %c1_i32_243 = arith.constant 1 : i32
    %560 = vector.broadcast %c1_i32_243 : i32 to vector<1x128xi32>
    %561 = arith.addi %18, %560 : vector<1x128xi32>
    %c0_i32_244 = arith.constant 0 : i32
    %562 = vector.broadcast %c0_i32_244 : i32 to vector<1x128xi32>
    %563 = arith.cmpi sge, %561, %562 : vector<1x128xi32>
    %c1_i32_245 = arith.constant 1 : i32
    %564 = vector.broadcast %c1_i32_245 : i32 to vector<1x128xi32>
    %565 = arith.addi %18, %564 : vector<1x128xi32>
    %c15_i32_246 = arith.constant 15 : i32
    %566 = vector.broadcast %c15_i32_246 : i32 to vector<1x128xi32>
    %567 = arith.cmpi sle, %565, %566 : vector<1x128xi32>
    %568 = arith.andi %563, %567 : vector<1x128xi1>
    %cst_247 = arith.constant 0.000000e+00 : f32
    %569 = vector.shape_cast %568 : vector<1x128xi1> to vector<1x128xi1>
    %570 = vector.broadcast %569 : vector<1x128xi1> to vector<16x128xi1>
    %571 = vector.broadcast %cst_247 : f32 to vector<16x128xf32>
    %572 = arith.select %570, %559, %571 : vector<16x128xi1>, vector<16x128xf32>
    %c20_248 = arith.constant 20 : index
    %c0_249 = arith.constant 0 : index
    %573 = vector.load %arg2[%c20_248, %c0_249] : memref<36x128xf32, #tpu.memory_space<vmem>>, vector<1x128xf32>
    %574 = vector.broadcast %573 : vector<1x128xf32> to vector<16x128xf32>
    %575 = arith.mulf %572, %574 : vector<16x128xf32>
    %576 = arith.addf %543, %575 : vector<16x128xf32>
    %c32_i32_250 = arith.constant 32 : i32
    %577 = tpu.dynamic_rotate %572 by %c32_i32_250 dim 1 : vector<16x128xf32>, i32 -> vector<16x128xf32>
    %c21_251 = arith.constant 21 : index
    %c0_252 = arith.constant 0 : index
    %578 = vector.load %arg2[%c21_251, %c0_252] : memref<36x128xf32, #tpu.memory_space<vmem>>, vector<1x128xf32>
    %579 = vector.broadcast %578 : vector<1x128xf32> to vector<16x128xf32>
    %580 = arith.mulf %577, %579 : vector<16x128xf32>
    %581 = arith.addf %548, %580 : vector<16x128xf32>
    %c64_i32_253 = arith.constant 64 : i32
    %582 = tpu.dynamic_rotate %572 by %c64_i32_253 dim 1 : vector<16x128xf32>, i32 -> vector<16x128xf32>
    %c22_254 = arith.constant 22 : index
    %c0_255 = arith.constant 0 : index
    %583 = vector.load %arg2[%c22_254, %c0_255] : memref<36x128xf32, #tpu.memory_space<vmem>>, vector<1x128xf32>
    %584 = vector.broadcast %583 : vector<1x128xf32> to vector<16x128xf32>
    %585 = arith.mulf %582, %584 : vector<16x128xf32>
    %586 = arith.addf %553, %585 : vector<16x128xf32>
    %c96_i32_256 = arith.constant 96 : i32
    %587 = tpu.dynamic_rotate %572 by %c96_i32_256 dim 1 : vector<16x128xf32>, i32 -> vector<16x128xf32>
    %c23_257 = arith.constant 23 : index
    %c0_258 = arith.constant 0 : index
    %588 = vector.load %arg2[%c23_257, %c0_258] : memref<36x128xf32, #tpu.memory_space<vmem>>, vector<1x128xf32>
    %589 = vector.broadcast %588 : vector<1x128xf32> to vector<16x128xf32>
    %590 = arith.mulf %587, %589 : vector<16x128xf32>
    %591 = arith.addf %558, %590 : vector<16x128xf32>
    %c15_i32_259 = arith.constant 15 : i32
    %592 = tpu.dynamic_rotate %381 by %c15_i32_259 dim 0 : vector<16x128xf32>, i32 -> vector<16x128xf32>
    %c1_i32_260 = arith.constant 1 : i32
    %593 = vector.broadcast %c1_i32_260 : i32 to vector<16x1xi32>
    %594 = arith.addi %1, %593 : vector<16x1xi32>
    %c0_i32_261 = arith.constant 0 : i32
    %595 = vector.broadcast %c0_i32_261 : i32 to vector<16x1xi32>
    %596 = arith.cmpi sge, %594, %595 : vector<16x1xi32>
    %c1_i32_262 = arith.constant 1 : i32
    %597 = vector.broadcast %c1_i32_262 : i32 to vector<16x1xi32>
    %598 = arith.addi %1, %597 : vector<16x1xi32>
    %c15_i32_263 = arith.constant 15 : i32
    %599 = vector.broadcast %c15_i32_263 : i32 to vector<16x1xi32>
    %600 = arith.cmpi sle, %598, %599 : vector<16x1xi32>
    %601 = arith.andi %596, %600 : vector<16x1xi1>
    %c1_i32_264 = arith.constant 1 : i32
    %602 = tpu.dynamic_rotate %592 by %c1_i32_264 dim 1 : vector<16x128xf32>, i32 -> vector<16x128xf32>
    %c-1_i32_265 = arith.constant -1 : i32
    %603 = vector.broadcast %c-1_i32_265 : i32 to vector<1x128xi32>
    %604 = arith.addi %18, %603 : vector<1x128xi32>
    %c0_i32_266 = arith.constant 0 : i32
    %605 = vector.broadcast %c0_i32_266 : i32 to vector<1x128xi32>
    %606 = arith.cmpi sge, %604, %605 : vector<1x128xi32>
    %c-1_i32_267 = arith.constant -1 : i32
    %607 = vector.broadcast %c-1_i32_267 : i32 to vector<1x128xi32>
    %608 = arith.addi %18, %607 : vector<1x128xi32>
    %c15_i32_268 = arith.constant 15 : i32
    %609 = vector.broadcast %c15_i32_268 : i32 to vector<1x128xi32>
    %610 = arith.cmpi sle, %608, %609 : vector<1x128xi32>
    %611 = arith.andi %606, %610 : vector<1x128xi1>
    %612 = vector.broadcast %601 : vector<16x1xi1> to vector<16x128xi1>
    %613 = vector.broadcast %611 : vector<1x128xi1> to vector<16x128xi1>
    %614 = arith.andi %612, %613 : vector<16x128xi1>
    %cst_269 = arith.constant 0.000000e+00 : f32
    %615 = vector.broadcast %cst_269 : f32 to vector<16x128xf32>
    %616 = arith.select %614, %602, %615 : vector<16x128xi1>, vector<16x128xf32>
    %c24_270 = arith.constant 24 : index
    %c0_271 = arith.constant 0 : index
    %617 = vector.load %arg2[%c24_270, %c0_271] : memref<36x128xf32, #tpu.memory_space<vmem>>, vector<1x128xf32>
    %618 = vector.broadcast %617 : vector<1x128xf32> to vector<16x128xf32>
    %619 = arith.mulf %616, %618 : vector<16x128xf32>
    %620 = arith.addf %576, %619 : vector<16x128xf32>
    %c32_i32_272 = arith.constant 32 : i32
    %621 = tpu.dynamic_rotate %616 by %c32_i32_272 dim 1 : vector<16x128xf32>, i32 -> vector<16x128xf32>
    %c25_273 = arith.constant 25 : index
    %c0_274 = arith.constant 0 : index
    %622 = vector.load %arg2[%c25_273, %c0_274] : memref<36x128xf32, #tpu.memory_space<vmem>>, vector<1x128xf32>
    %623 = vector.broadcast %622 : vector<1x128xf32> to vector<16x128xf32>
    %624 = arith.mulf %621, %623 : vector<16x128xf32>
    %625 = arith.addf %581, %624 : vector<16x128xf32>
    %c64_i32_275 = arith.constant 64 : i32
    %626 = tpu.dynamic_rotate %616 by %c64_i32_275 dim 1 : vector<16x128xf32>, i32 -> vector<16x128xf32>
    %c26_276 = arith.constant 26 : index
    %c0_277 = arith.constant 0 : index
    %627 = vector.load %arg2[%c26_276, %c0_277] : memref<36x128xf32, #tpu.memory_space<vmem>>, vector<1x128xf32>
    %628 = vector.broadcast %627 : vector<1x128xf32> to vector<16x128xf32>
    %629 = arith.mulf %626, %628 : vector<16x128xf32>
    %630 = arith.addf %586, %629 : vector<16x128xf32>
    %c96_i32_278 = arith.constant 96 : i32
    %631 = tpu.dynamic_rotate %616 by %c96_i32_278 dim 1 : vector<16x128xf32>, i32 -> vector<16x128xf32>
    %c27_279 = arith.constant 27 : index
    %c0_280 = arith.constant 0 : index
    %632 = vector.load %arg2[%c27_279, %c0_280] : memref<36x128xf32, #tpu.memory_space<vmem>>, vector<1x128xf32>
    %633 = vector.broadcast %632 : vector<1x128xf32> to vector<16x128xf32>
    %634 = arith.mulf %631, %633 : vector<16x128xf32>
    %635 = arith.addf %591, %634 : vector<16x128xf32>
    %c15_i32_281 = arith.constant 15 : i32
    %636 = tpu.dynamic_rotate %381 by %c15_i32_281 dim 0 : vector<16x128xf32>, i32 -> vector<16x128xf32>
    %c1_i32_282 = arith.constant 1 : i32
    %637 = vector.broadcast %c1_i32_282 : i32 to vector<16x1xi32>
    %638 = arith.addi %1, %637 : vector<16x1xi32>
    %c0_i32_283 = arith.constant 0 : i32
    %639 = vector.broadcast %c0_i32_283 : i32 to vector<16x1xi32>
    %640 = arith.cmpi sge, %638, %639 : vector<16x1xi32>
    %c1_i32_284 = arith.constant 1 : i32
    %641 = vector.broadcast %c1_i32_284 : i32 to vector<16x1xi32>
    %642 = arith.addi %1, %641 : vector<16x1xi32>
    %c15_i32_285 = arith.constant 15 : i32
    %643 = vector.broadcast %c15_i32_285 : i32 to vector<16x1xi32>
    %644 = arith.cmpi sle, %642, %643 : vector<16x1xi32>
    %645 = arith.andi %640, %644 : vector<16x1xi1>
    %cst_286 = arith.constant 0.000000e+00 : f32
    %646 = vector.shape_cast %645 : vector<16x1xi1> to vector<16x1xi1>
    %647 = vector.broadcast %646 : vector<16x1xi1> to vector<16x128xi1>
    %648 = vector.broadcast %cst_286 : f32 to vector<16x128xf32>
    %649 = arith.select %647, %636, %648 : vector<16x128xi1>, vector<16x128xf32>
    %c28_287 = arith.constant 28 : index
    %c0_288 = arith.constant 0 : index
    %650 = vector.load %arg2[%c28_287, %c0_288] : memref<36x128xf32, #tpu.memory_space<vmem>>, vector<1x128xf32>
    %651 = vector.broadcast %650 : vector<1x128xf32> to vector<16x128xf32>
    %652 = arith.mulf %649, %651 : vector<16x128xf32>
    %653 = arith.addf %620, %652 : vector<16x128xf32>
    %c32_i32_289 = arith.constant 32 : i32
    %654 = tpu.dynamic_rotate %649 by %c32_i32_289 dim 1 : vector<16x128xf32>, i32 -> vector<16x128xf32>
    %c29_290 = arith.constant 29 : index
    %c0_291 = arith.constant 0 : index
    %655 = vector.load %arg2[%c29_290, %c0_291] : memref<36x128xf32, #tpu.memory_space<vmem>>, vector<1x128xf32>
    %656 = vector.broadcast %655 : vector<1x128xf32> to vector<16x128xf32>
    %657 = arith.mulf %654, %656 : vector<16x128xf32>
    %658 = arith.addf %625, %657 : vector<16x128xf32>
    %c64_i32_292 = arith.constant 64 : i32
    %659 = tpu.dynamic_rotate %649 by %c64_i32_292 dim 1 : vector<16x128xf32>, i32 -> vector<16x128xf32>
    %c30_293 = arith.constant 30 : index
    %c0_294 = arith.constant 0 : index
    %660 = vector.load %arg2[%c30_293, %c0_294] : memref<36x128xf32, #tpu.memory_space<vmem>>, vector<1x128xf32>
    %661 = vector.broadcast %660 : vector<1x128xf32> to vector<16x128xf32>
    %662 = arith.mulf %659, %661 : vector<16x128xf32>
    %663 = arith.addf %630, %662 : vector<16x128xf32>
    %c96_i32_295 = arith.constant 96 : i32
    %664 = tpu.dynamic_rotate %649 by %c96_i32_295 dim 1 : vector<16x128xf32>, i32 -> vector<16x128xf32>
    %c31_296 = arith.constant 31 : index
    %c0_297 = arith.constant 0 : index
    %665 = vector.load %arg2[%c31_296, %c0_297] : memref<36x128xf32, #tpu.memory_space<vmem>>, vector<1x128xf32>
    %666 = vector.broadcast %665 : vector<1x128xf32> to vector<16x128xf32>
    %667 = arith.mulf %664, %666 : vector<16x128xf32>
    %668 = arith.addf %635, %667 : vector<16x128xf32>
    %c15_i32_298 = arith.constant 15 : i32
    %669 = tpu.dynamic_rotate %381 by %c15_i32_298 dim 0 : vector<16x128xf32>, i32 -> vector<16x128xf32>
    %c1_i32_299 = arith.constant 1 : i32
    %670 = vector.broadcast %c1_i32_299 : i32 to vector<16x1xi32>
    %671 = arith.addi %1, %670 : vector<16x1xi32>
    %c0_i32_300 = arith.constant 0 : i32
    %672 = vector.broadcast %c0_i32_300 : i32 to vector<16x1xi32>
    %673 = arith.cmpi sge, %671, %672 : vector<16x1xi32>
    %c1_i32_301 = arith.constant 1 : i32
    %674 = vector.broadcast %c1_i32_301 : i32 to vector<16x1xi32>
    %675 = arith.addi %1, %674 : vector<16x1xi32>
    %c15_i32_302 = arith.constant 15 : i32
    %676 = vector.broadcast %c15_i32_302 : i32 to vector<16x1xi32>
    %677 = arith.cmpi sle, %675, %676 : vector<16x1xi32>
    %678 = arith.andi %673, %677 : vector<16x1xi1>
    %c127_i32_303 = arith.constant 127 : i32
    %679 = tpu.dynamic_rotate %669 by %c127_i32_303 dim 1 : vector<16x128xf32>, i32 -> vector<16x128xf32>
    %c1_i32_304 = arith.constant 1 : i32
    %680 = vector.broadcast %c1_i32_304 : i32 to vector<1x128xi32>
    %681 = arith.addi %18, %680 : vector<1x128xi32>
    %c0_i32_305 = arith.constant 0 : i32
    %682 = vector.broadcast %c0_i32_305 : i32 to vector<1x128xi32>
    %683 = arith.cmpi sge, %681, %682 : vector<1x128xi32>
    %c1_i32_306 = arith.constant 1 : i32
    %684 = vector.broadcast %c1_i32_306 : i32 to vector<1x128xi32>
    %685 = arith.addi %18, %684 : vector<1x128xi32>
    %c15_i32_307 = arith.constant 15 : i32
    %686 = vector.broadcast %c15_i32_307 : i32 to vector<1x128xi32>
    %687 = arith.cmpi sle, %685, %686 : vector<1x128xi32>
    %688 = arith.andi %683, %687 : vector<1x128xi1>
    %689 = vector.broadcast %678 : vector<16x1xi1> to vector<16x128xi1>
    %690 = vector.broadcast %688 : vector<1x128xi1> to vector<16x128xi1>
    %691 = arith.andi %689, %690 : vector<16x128xi1>
    %cst_308 = arith.constant 0.000000e+00 : f32
    %692 = vector.broadcast %cst_308 : f32 to vector<16x128xf32>
    %693 = arith.select %691, %679, %692 : vector<16x128xi1>, vector<16x128xf32>
    %c32_309 = arith.constant 32 : index
    %c0_310 = arith.constant 0 : index
    %694 = vector.load %arg2[%c32_309, %c0_310] : memref<36x128xf32, #tpu.memory_space<vmem>>, vector<1x128xf32>
    %695 = vector.broadcast %694 : vector<1x128xf32> to vector<16x128xf32>
    %696 = arith.mulf %693, %695 : vector<16x128xf32>
    %697 = arith.addf %653, %696 : vector<16x128xf32>
    %c32_i32_311 = arith.constant 32 : i32
    %698 = tpu.dynamic_rotate %693 by %c32_i32_311 dim 1 : vector<16x128xf32>, i32 -> vector<16x128xf32>
    %c33_312 = arith.constant 33 : index
    %c0_313 = arith.constant 0 : index
    %699 = vector.load %arg2[%c33_312, %c0_313] : memref<36x128xf32, #tpu.memory_space<vmem>>, vector<1x128xf32>
    %700 = vector.broadcast %699 : vector<1x128xf32> to vector<16x128xf32>
    %701 = arith.mulf %698, %700 : vector<16x128xf32>
    %702 = arith.addf %658, %701 : vector<16x128xf32>
    %c64_i32_314 = arith.constant 64 : i32
    %703 = tpu.dynamic_rotate %693 by %c64_i32_314 dim 1 : vector<16x128xf32>, i32 -> vector<16x128xf32>
    %c34_315 = arith.constant 34 : index
    %c0_316 = arith.constant 0 : index
    %704 = vector.load %arg2[%c34_315, %c0_316] : memref<36x128xf32, #tpu.memory_space<vmem>>, vector<1x128xf32>
    %705 = vector.broadcast %704 : vector<1x128xf32> to vector<16x128xf32>
    %706 = arith.mulf %703, %705 : vector<16x128xf32>
    %707 = arith.addf %663, %706 : vector<16x128xf32>
    %c96_i32_317 = arith.constant 96 : i32
    %708 = tpu.dynamic_rotate %693 by %c96_i32_317 dim 1 : vector<16x128xf32>, i32 -> vector<16x128xf32>
    %c35_318 = arith.constant 35 : index
    %c0_319 = arith.constant 0 : index
    %709 = vector.load %arg2[%c35_318, %c0_319] : memref<36x128xf32, #tpu.memory_space<vmem>>, vector<1x128xf32>
    %710 = vector.broadcast %709 : vector<1x128xf32> to vector<16x128xf32>
    %711 = arith.mulf %708, %710 : vector<16x128xf32>
    %712 = arith.addf %668, %711 : vector<16x128xf32>
    %713 = arith.addf %697, %702 : vector<16x128xf32>
    %714 = arith.addf %713, %707 : vector<16x128xf32>
    %715 = arith.addf %714, %712 : vector<16x128xf32>
    %cst_320 = arith.constant dense<0.000000e+00> : vector<128xf32>
    %716 = vector.multi_reduction <add>, %715, %cst_320 [0] : vector<16x128xf32> to vector<128xf32>
    %717 = vector.shape_cast %716 : vector<128xf32> to vector<1x128xf32>
    %718 = arith.mulf %715, %715 : vector<16x128xf32>
    %cst_321 = arith.constant dense<0.000000e+00> : vector<128xf32>
    %719 = vector.multi_reduction <add>, %718, %cst_321 [0] : vector<16x128xf32> to vector<128xf32>
    %720 = vector.shape_cast %719 : vector<128xf32> to vector<1x128xf32>
    %c0_322 = arith.constant 0 : index
    %c0_323 = arith.constant 0 : index
    %721 = vector.load %arg5[%c0_322, %c0_323] : memref<128x128xf32, #tpu.memory_space<vmem>>, vector<128x128xf32>
    %cst_324 = arith.constant dense<0.000000e+00> : vector<1x128xf32>
    %722 = tpu.matmul %717, %721, %cst_324 {dimension_numbers = #tpu.dot_dimension_numbers<[1], [0], [0], [1], [0, 0, 1, 1], [], []>} : vector<1x128xf32>, vector<128x128xf32>, vector<1x128xf32> -> vector<1x128xf32>
    %cst_325 = arith.constant 0.001953125 : f32
    %723 = vector.broadcast %cst_325 : f32 to vector<1x128xf32>
    %724 = arith.mulf %722, %723 : vector<1x128xf32>
    %c0_326 = arith.constant 0 : index
    %c0_327 = arith.constant 0 : index
    %725 = vector.load %arg5[%c0_326, %c0_327] : memref<128x128xf32, #tpu.memory_space<vmem>>, vector<128x128xf32>
    %cst_328 = arith.constant dense<0.000000e+00> : vector<1x128xf32>
    %726 = tpu.matmul %720, %725, %cst_328 {dimension_numbers = #tpu.dot_dimension_numbers<[1], [0], [0], [1], [0, 0, 1, 1], [], []>} : vector<1x128xf32>, vector<128x128xf32>, vector<1x128xf32> -> vector<1x128xf32>
    %cst_329 = arith.constant 0.001953125 : f32
    %727 = vector.broadcast %cst_329 : f32 to vector<1x128xf32>
    %728 = arith.mulf %726, %727 : vector<1x128xf32>
    %729 = arith.mulf %724, %724 : vector<1x128xf32>
    %730 = arith.subf %728, %729 : vector<1x128xf32>
    %cst_330 = arith.constant 9.99999974E-6 : f32
    %731 = vector.broadcast %cst_330 : f32 to vector<1x128xf32>
    %732 = arith.addf %730, %731 : vector<1x128xf32>
    %733 = math.rsqrt %732 : vector<1x128xf32>
    %c0_331 = arith.constant 0 : index
    %c0_332 = arith.constant 0 : index
    %734 = vector.load %arg4[%c0_331, %c0_332] : memref<2x128xf32, #tpu.memory_space<vmem>>, vector<1x128xf32>
    %c1_333 = arith.constant 1 : index
    %c0_334 = arith.constant 0 : index
    %735 = vector.load %arg4[%c1_333, %c0_334] : memref<2x128xf32, #tpu.memory_space<vmem>>, vector<1x128xf32>
    %736 = vector.broadcast %724 : vector<1x128xf32> to vector<16x128xf32>
    %737 = arith.subf %715, %736 : vector<16x128xf32>
    %738 = arith.mulf %733, %734 : vector<1x128xf32>
    %739 = vector.broadcast %738 : vector<1x128xf32> to vector<16x128xf32>
    %740 = arith.mulf %737, %739 : vector<16x128xf32>
    %741 = vector.broadcast %735 : vector<1x128xf32> to vector<16x128xf32>
    %742 = arith.addf %740, %741 : vector<16x128xf32>
    %743 = arith.addf %742, %0 : vector<16x128xf32>
    %cst_335 = arith.constant 0.000000e+00 : f32
    %744 = vector.broadcast %cst_335 : f32 to vector<16x128xf32>
    %745 = arith.maximumf %743, %744 : vector<16x128xf32>
    %c0_336 = arith.constant 0 : index
    %c0_337 = arith.constant 0 : index
    %746 = vector.load %arg6[%c0_336, %c0_337] : memref<16x128xf32, #tpu.memory_space<vmem>>, vector<16x128xf32>
    tpu.vector_store %arg6[%c0_336, %c0_337], %745 {strides = array<i32>} : memref<16x128xf32, #tpu.memory_space<vmem>>, vector<16x128xf32>,
    return
  }
}

</mosaic_0001>

<llo_original>
// kernel: tpu_custom_call.1
$region0: #{tpu_custom_call.1}
  #allocation0 [shape = 'u32[]', space=smem, size = 0x4, offset = 0x4, fixed_abs, tag = 'smem constant byte address 0x4 - core index']
  #allocation1 [shape = 'u32[144,128]{1,0:T(1,128)}', space=vmem, size = 0x12000, scoped, tag = 'internal scratch']
  %s0 = inlined_call_operand.hbm [shape: f32[16,128], index: 0, kind: input, shape index: {}]
  %s1 = inlined_call_operand.hbm [shape: f32[36,128], index: 1, kind: input, shape index: {}]
  %s2 = inlined_call_operand.hbm [shape: f32[36,128], index: 2, kind: input, shape index: {}]
  %s3 = inlined_call_operand.vmem [shape: f32[2,128], index: 3, kind: input, shape index: {}]
  %s4 = inlined_call_operand.vmem [shape: f32[2,128], index: 4, kind: input, shape index: {}]
  %s5 = inlined_call_operand.hbm [shape: f32[128,128], index: 5, kind: input, shape index: {}]
  %s6 = inlined_call_operand.hbm [shape: f32[16,128], index: 6, kind: output, shape index: {}]
  %s7 = sld [smem:[#allocation0]]
  $region50: #{tpu_custom_call.1} parent=0
    _
  %s9 = ssub.s32 1, %s7
  %s10 = scalar_select 0, %s9, %s7
  $region1: #{tpu_custom_call.1} parent=0
    #allocation2 [shape = 'u8[8192]{0}', space=vmem, size = 0x2000, scoped, tag = 'input window, operand 0, single buffered']
    #allocation3 [shape = 's32[1]{0}', space=sflag, size = 0x4, scoped, tag = 'scoped memory for tpu_custom_call.1']
    #allocation4 [shape = 's32[1]{0}', space=sflag, size = 0x4, scoped, tag = 'scoped memory for tpu_custom_call.1']
    #allocation5 [shape = 'u8[20480]{0}', space=vmem, size = 0x5000, scoped, tag = 'input window, operand 1, single buffered']
    #allocation6 [shape = 's32[1]{0}', space=sflag, size = 0x4, scoped, tag = 'scoped memory for tpu_custom_call.1']
    #allocation7 [shape = 'u8[20480]{0}', space=vmem, size = 0x5000, scoped, tag = 'input window, operand 2, single buffered']
    #allocation8 [shape = 'u8[65536]{0}', space=vmem, size = 0x10000, scoped, tag = 'input window, operand 5, single buffered']
    #allocation9 [shape = 's32[1]{0}', space=sflag, size = 0x4, scoped, tag = 'scoped memory for tpu_custom_call.1']
    #allocation10 [shape = 'u8[8192]{0}', space=vmem, size = 0x2000, scoped, tag = 'output window, operand 0, single buffered']
    %11 = vsyncpa [#allocation3], 0
    %12 = vsyncpa [#allocation6], 0
    %13 = vsyncpa [#allocation9], 0
    %14 = vsyncpa [#allocation4], 0
    // Predicated region
    $region2: #{tpu_custom_call.1} parent=1 // pred_check
      _
    $region3: #{tpu_custom_call.1} parent=1 // pred_check_branch
      %16 = sbr.rel (0) target = $region5
    $region4: #{tpu_custom_call.1} parent=1 // pred_region
      %s18 = ssub.s32 256, 256
      %19 = vsyncadd [#allocation3], %s18
      %s20 = sshll.u32 [#allocation2], 4
      %s21 = int_to_ptr.vmem [resolvable:$true] %s20
      %26 = dma.hbm_to_vmem [thread:$0]  %s0, 256, %s21, [#allocation3], 128, 128, 8
    $region5: #{tpu_custom_call.1} parent=1 // pred_fallthru
      _
    // Predicated region
    $region6: #{tpu_custom_call.1} parent=1 // pred_check
      _
    $region7: #{tpu_custom_call.1} parent=1 // pred_check_branch
      %28 = sbr.rel (0) target = $region9
    $region8: #{tpu_custom_call.1} parent=1 // pred_region
      %s30 = ssub.s32 640, 640
      %31 = vsyncadd [#allocation6], %s30
      %s32 = sshll.u32 [#allocation5], 4
      %s33 = int_to_ptr.vmem [resolvable:$true] %s32
      %38 = dma.hbm_to_vmem [thread:$0]  %s1, 640, %s33, [#allocation6], 128, 128, 8
    $region9: #{tpu_custom_call.1} parent=1 // pred_fallthru
      _
    // Predicated region
    $region10: #{tpu_custom_call.1} parent=1 // pred_check
      _
    $region11: #{tpu_custom_call.1} parent=1 // pred_check_branch
      %40 = sbr.rel (0) target = $region13
    $region12: #{tpu_custom_call.1} parent=1 // pred_region
      %s42 = ssub.s32 640, 640
      %43 = vsyncadd [#allocation6], %s42
      %s44 = sshll.u32 [#allocation7], 4
      %s45 = int_to_ptr.vmem [resolvable:$true] %s44
      %50 = dma.hbm_to_vmem [thread:$0]  %s2, 640, %s45, [#allocation6], 128, 128, 8
    $region13: #{tpu_custom_call.1} parent=1 // pred_fallthru
      _
    // Predicated region
    $region14: #{tpu_custom_call.1} parent=1 // pred_check
      _
    $region15: #{tpu_custom_call.1} parent=1 // pred_check_branch
      %52 = sbr.rel (0) target = $region17
    $region16: #{tpu_custom_call.1} parent=1 // pred_region
      _
    $region17: #{tpu_custom_call.1} parent=1 // pred_fallthru
      _
    // Predicated region
    $region18: #{tpu_custom_call.1} parent=1 // pred_check
      _
    $region19: #{tpu_custom_call.1} parent=1 // pred_check_branch
      %54 = sbr.rel (0) target = $region21
    $region20: #{tpu_custom_call.1} parent=1 // pred_region
      _
    $region21: #{tpu_custom_call.1} parent=1 // pred_fallthru
      _
    // Predicated region
    $region22: #{tpu_custom_call.1} parent=1 // pred_check
      _
    $region23: #{tpu_custom_call.1} parent=1 // pred_check_branch
      %56 = sbr.rel (0) target = $region25
    $region24: #{tpu_custom_call.1} parent=1 // pred_region
      %s58 = ssub.s32 2048, 2048
      %59 = vsyncadd [#allocation9], %s58
      %s60 = sshll.u32 [#allocation8], 4
      %s61 = int_to_ptr.vmem [resolvable:$true] %s60
      %66 = dma.hbm_to_vmem [thread:$0]  %s5, 2048, %s61, [#allocation9], 128, 128, 8
    $region25: #{tpu_custom_call.1} parent=1 // pred_fallthru
      _
    // Predicated region
    $region26: #{tpu_custom_call.1} parent=1 // pred_check
      _
    $region27: #{tpu_custom_call.1} parent=1 // pred_check_branch
      %68 = sbr.rel (0) target = $region29
    $region28: #{tpu_custom_call.1} parent=1 // pred_region
      %69 = dma.done [#allocation3], 256
    $region29: #{tpu_custom_call.1} parent=1 // pred_fallthru
      _
    // Predicated region
    $region30: #{tpu_custom_call.1} parent=1 // pred_check
      _
    $region31: #{tpu_custom_call.1} parent=1 // pred_check_branch
      %71 = sbr.rel (0) target = $region33
    $region32: #{tpu_custom_call.1} parent=1 // pred_region
      %72 = dma.done [#allocation6], 640
    $region33: #{tpu_custom_call.1} parent=1 // pred_fallthru
      _
    // Predicated region
    $region34: #{tpu_custom_call.1} parent=1 // pred_check
      _
    $region35: #{tpu_custom_call.1} parent=1 // pred_check_branch
      %74 = sbr.rel (0) target = $region37
    $region36: #{tpu_custom_call.1} parent=1 // pred_region
      %75 = dma.done [#allocation6], 640
    $region37: #{tpu_custom_call.1} parent=1 // pred_fallthru
      _
    // Predicated region
    $region38: #{tpu_custom_call.1} parent=1 // pred_check
      _
    $region39: #{tpu_custom_call.1} parent=1 // pred_check_branch
      %77 = sbr.rel (0) target = $region41
    $region40: #{tpu_custom_call.1} parent=1 // pred_region
      %78 = dma.done [#allocation9], 2048
    $region41: #{tpu_custom_call.1} parent=1 // pred_fallthru
      _
    %v79 = vld [vmem:[#allocation2] sm:$0xff]
    %v80 = vld [vmem:[#allocation2 + $0x8] sm:$0xff]
    %v81 = vlaneseq
    %v82 = vshrl.u32 %v81, 7
    %v83 = vadd.s32 %v82, 8
    %v84 = vlaneseq
    %v85 = vand.u32 %v84, 127
    %vm86 = vcmp.lt.s32.totalorder %v85, 0
    %v87 = vsub.s32 0, %v85
    %v88 = vsel %vm86, %v87, %v85
    %v89 = vshrl.u32 %v88, 4
    %v90 = vand.u32 %v88, 15
    %v91 = vsub.s32 0, %v90
    %v92 = vsel %vm86, %v91, %v90
    %vm93 = vcmp.ne.s32.totalorder %v92, 0
    %vm94 = vcmp.lt.s32.totalorder %v92, 0
    %vm95 = vmand %vm94, %vm93
    %v96 = vadd.s32 %v92, 16
    %v97 = vsel %vm95, %v96, %v92
    %v98 = vrot.slane %v79, 7
    %v99 = vrot.slane %v80, 7
    %vm100 = vcmp.lt.s32.totalorder %v82, 1
    %v101 = vsel %vm100, %v98, %v99
    %v102 = vsel %vm100, %v99, %v98
    %v103 = vadd.s32 %v82, 4294967295
    %v104 = vadd.s32 %v83, 4294967295
    %vm105 = vcmp.ge.s32.totalorder %v103, 0
    %vm106 = vcmp.ge.s32.totalorder %v104, 0
    %vm107 = vcmp.le.s32.totalorder %v103, 15
    %vm108 = vcmp.le.s32.totalorder %v104, 15
    %vm109 = vmand %vm105, %vm107
    %vm110 = vmand %vm106, %vm108
    %111 = vrot.lane.b32.xlu0 %v102, 1
    %v112 = vpop.permute.xlu0 %111
    %113 = vrot.lane.b32.xlu0 %v101, 1
    %v114 = vpop.permute.xlu0 %113
    %v115 = vadd.s32 %v97, 4294967295
    %vm116 = vcmp.ge.s32.totalorder %v115, 0
    %vm117 = vcmp.le.s32.totalorder %v115, 15
    %vm118 = vmand %vm116, %vm117
    %v119 = vsel %vm109, 1, 0
    %v120 = vsel %vm110, 1, 0
    %vm121 = vcmp.eq.s32.totalorder %v119, 1
    %vm122 = vcmp.eq.s32.totalorder %v120, 1
    %v123 = vsel %vm118, 1, 0
    %vm124 = vcmp.eq.s32.totalorder %v123, 1
    %vm125 = vmand %vm121, %vm124
    %vm126 = vmand %vm122, %vm124
    %v127 = vsel %vm125, %v112, 0.0
    %v128 = vsel %vm126, %v114, 0.0
    %v129 = vld [vmem:[#allocation5] sm:$0x1]
    %v130 = vlaneseq
    %v131 = vshrl.u32 %v130, 7
    %v132 = vsub.s32 0, %v131
    %v133 = vrot.slane %v129, %v132
    %v134 = vmul.f32 %v127, %v133
    %v135 = vmul.f32 %v128, %v133
    %v136 = vadd.f32 %v134, 0.0
    %v137 = vadd.f32 %v135, 0.0
    %138 = vrot.lane.b32.xlu0 %v127, 32
    %v139 = vpop.permute.xlu0 %138
    %140 = vrot.lane.b32.xlu0 %v128, 32
    %v141 = vpop.permute.xlu0 %140
    %v142 = vld [vmem:[#allocation5 + $0x1] sm:$0x1]
    %v143 = vlaneseq
    %v144 = vshrl.u32 %v143, 7
    %v145 = vsub.s32 0, %v144
    %v146 = vrot.slane %v142, %v145
    %v147 = vmul.f32 %v139, %v146
    %v148 = vmul.f32 %v141, %v146
    %v149 = vadd.f32 %v147, 0.0
    %v150 = vadd.f32 %v148, 0.0
    %151 = vrot.lane.b32.xlu0 %v127, 64
    %v152 = vpop.permute.xlu0 %151
    %153 = vrot.lane.b32.xlu0 %v128, 64
    %v154 = vpop.permute.xlu0 %153
    %v155 = vld [vmem:[#allocation5 + $0x2] sm:$0x1]
    %v156 = vlaneseq
    %v157 = vshrl.u32 %v156, 7
    %v158 = vsub.s32 0, %v157
    %v159 = vrot.slane %v155, %v158
    %v160 = vmul.f32 %v152, %v159
    %v161 = vmul.f32 %v154, %v159
    %v162 = vadd.f32 %v160, 0.0
    %v163 = vadd.f32 %v161, 0.0
    %164 = vrot.lane.b32.xlu0 %v127, 96
    %v165 = vpop.permute.xlu0 %164
    %166 = vrot.lane.b32.xlu0 %v128, 96
    %v167 = vpop.permute.xlu0 %166
    %v168 = vld [vmem:[#allocation5 + $0x3] sm:$0x1]
    %v169 = vlaneseq
    %v170 = vshrl.u32 %v169, 7
    %v171 = vsub.s32 0, %v170
    %v172 = vrot.slane %v168, %v171
    %v173 = vmul.f32 %v165, %v172
    %v174 = vmul.f32 %v167, %v172
    %v175 = vadd.f32 %v173, 0.0
    %v176 = vadd.f32 %v174, 0.0
    %v177 = vsel %vm121, %v102, 0.0
    %v178 = vsel %vm122, %v101, 0.0
    %v179 = vld [vmem:[#allocation5 + $0x4] sm:$0x1]
    %v180 = vlaneseq
    %v181 = vshrl.u32 %v180, 7
    %v182 = vsub.s32 0, %v181
    %v183 = vrot.slane %v179, %v182
    %v184 = vmul.f32 %v177, %v183
    %v185 = vmul.f32 %v178, %v183
    %v186 = vadd.f32 %v136, %v184
    %v187 = vadd.f32 %v137, %v185
    %188 = vrot.lane.b32.xlu0 %v177, 32
    %v189 = vpop.permute.xlu0 %188
    %190 = vrot.lane.b32.xlu0 %v178, 32
    %v191 = vpop.permute.xlu0 %190
    %v192 = vld [vmem:[#allocation5 + $0x5] sm:$0x1]
    %v193 = vlaneseq
    %v194 = vshrl.u32 %v193, 7
    %v195 = vsub.s32 0, %v194
    %v196 = vrot.slane %v192, %v195
    %v197 = vmul.f32 %v189, %v196
    %v198 = vmul.f32 %v191, %v196
    %v199 = vadd.f32 %v149, %v197
    %v200 = vadd.f32 %v150, %v198
    %201 = vrot.lane.b32.xlu0 %v177, 64
    %v202 = vpop.permute.xlu0 %201
    %203 = vrot.lane.b32.xlu0 %v178, 64
    %v204 = vpop.permute.xlu0 %203
    %v205 = vld [vmem:[#allocation5 + $0x6] sm:$0x1]
    %v206 = vlaneseq
    %v207 = vshrl.u32 %v206, 7
    %v208 = vsub.s32 0, %v207
    %v209 = vrot.slane %v205, %v208
    %v210 = vmul.f32 %v202, %v209
    %v211 = vmul.f32 %v204, %v209
    %v212 = vadd.f32 %v162, %v210
    %v213 = vadd.f32 %v163, %v211
    %214 = vrot.lane.b32.xlu0 %v177, 96
    %v215 = vpop.permute.xlu0 %214
    %216 = vrot.lane.b32.xlu0 %v178, 96
    %v217 = vpop.permute.xlu0 %216
    %v218 = vld [vmem:[#allocation5 + $0x7] sm:$0x1]
    %v219 = vlaneseq
    %v220 = vshrl.u32 %v219, 7
    %v221 = vsub.s32 0, %v220
    %v222 = vrot.slane %v218, %v221
    %v223 = vmul.f32 %v215, %v222
    %v224 = vmul.f32 %v217, %v222
    %v225 = vadd.f32 %v175, %v223
    %v226 = vadd.f32 %v176, %v224
    %227 = vrot.lane.b32.xlu0 %v102, 127
    %v228 = vpop.permute.xlu0 %227
    %229 = vrot.lane.b32.xlu0 %v101, 127
    %v230 = vpop.permute.xlu0 %229
    %v231 = vadd.s32 %v97, 1
    %vm232 = vcmp.ge.s32.totalorder %v231, 0
    %vm233 = vcmp.le.s32.totalorder %v231, 15
    %vm234 = vmand %vm232, %vm233
    %v235 = vsel %vm234, 1, 0
    %vm236 = vcmp.eq.s32.totalorder %v235, 1
    %vm237 = vmand %vm121, %vm236
    %vm238 = vmand %vm122, %vm236
    %v239 = vsel %vm237, %v228, 0.0
    %v240 = vsel %vm238, %v230, 0.0
    %v241 = vld [vmem:[#allocation5 + $0x8] sm:$0x1]
    %v242 = vlaneseq
    %v243 = vshrl.u32 %v242, 7
    %v244 = vsub.s32 0, %v243
    %v245 = vrot.slane %v241, %v244
    %v246 = vmul.f32 %v239, %v245
    %v247 = vmul.f32 %v240, %v245
    %v248 = vadd.f32 %v186, %v246
    %v249 = vadd.f32 %v187, %v247
    %250 = vrot.lane.b32.xlu0 %v239, 32
    %v251 = vpop.permute.xlu0 %250
    %252 = vrot.lane.b32.xlu0 %v240, 32
    %v253 = vpop.permute.xlu0 %252
    %v254 = vld [vmem:[#allocation5 + $0x9] sm:$0x1]
    %v255 = vlaneseq
    %v256 = vshrl.u32 %v255, 7
    %v257 = vsub.s32 0, %v256
    %v258 = vrot.slane %v254, %v257
    %v259 = vmul.f32 %v251, %v258
    %v260 = vmul.f32 %v253, %v258
    %v261 = vadd.f32 %v199, %v259
    %v262 = vadd.f32 %v200, %v260
    %263 = vrot.lane.b32.xlu0 %v239, 64
    %v264 = vpop.permute.xlu0 %263
    %265 = vrot.lane.b32.xlu0 %v240, 64
    %v266 = vpop.permute.xlu0 %265
    %v267 = vld [vmem:[#allocation5 + $0xa] sm:$0x1]
    %v268 = vlaneseq
    %v269 = vshrl.u32 %v268, 7
    %v270 = vsub.s32 0, %v269
    %v271 = vrot.slane %v267, %v270
    %v272 = vmul.f32 %v264, %v271
    %v273 = vmul.f32 %v266, %v271
    %v274 = vadd.f32 %v212, %v272
    %v275 = vadd.f32 %v213, %v273
    %276 = vrot.lane.b32.xlu0 %v239, 96
    %v277 = vpop.permute.xlu0 %276
    %278 = vrot.lane.b32.xlu0 %v240, 96
    %v279 = vpop.permute.xlu0 %278
    %v280 = vld [vmem:[#allocation5 + $0xb] sm:$0x1]
    %v281 = vlaneseq
    %v282 = vshrl.u32 %v281, 7
    %v283 = vsub.s32 0, %v282
    %v284 = vrot.slane %v280, %v283
    %v285 = vmul.f32 %v277, %v284
    %v286 = vmul.f32 %v279, %v284
    %v287 = vadd.f32 %v225, %v285
    %v288 = vadd.f32 %v226, %v286
    %289 = vrot.lane.b32.xlu0 %v79, 1
    %v290 = vpop.permute.xlu0 %289
    %291 = vrot.lane.b32.xlu0 %v80, 1
    %v292 = vpop.permute.xlu0 %291
    %v293 = vsel %vm124, %v290, 0.0
    %v294 = vsel %vm124, %v292, 0.0
    %v295 = vld [vmem:[#allocation5 + $0xc] sm:$0x1]
    %v296 = vlaneseq
    %v297 = vshrl.u32 %v296, 7
    %v298 = vsub.s32 0, %v297
    %v299 = vrot.slane %v295, %v298
    %v300 = vmul.f32 %v293, %v299
    %v301 = vmul.f32 %v294, %v299
    %v302 = vadd.f32 %v248, %v300
    %v303 = vadd.f32 %v249, %v301
    %304 = vrot.lane.b32.xlu0 %v293, 32
    %v305 = vpop.permute.xlu0 %304
    %306 = vrot.lane.b32.xlu0 %v294, 32
    %v307 = vpop.permute.xlu0 %306
    %v308 = vld [vmem:[#allocation5 + $0xd] sm:$0x1]
    %v309 = vlaneseq
    %v310 = vshrl.u32 %v309, 7
    %v311 = vsub.s32 0, %v310
    %v312 = vrot.slane %v308, %v311
    %v313 = vmul.f32 %v305, %v312
    %v314 = vmul.f32 %v307, %v312
    %v315 = vadd.f32 %v261, %v313
    %v316 = vadd.f32 %v262, %v314
    %317 = vrot.lane.b32.xlu0 %v293, 64
    %v318 = vpop.permute.xlu0 %317
    %319 = vrot.lane.b32.xlu0 %v294, 64
    %v320 = vpop.permute.xlu0 %319
    %v321 = vld [vmem:[#allocation5 + $0xe] sm:$0x1]
    %v322 = vlaneseq
    %v323 = vshrl.u32 %v322, 7
    %v324 = vsub.s32 0, %v323
    %v325 = vrot.slane %v321, %v324
    %v326 = vmul.f32 %v318, %v325
    %v327 = vmul.f32 %v320, %v325
    %v328 = vadd.f32 %v274, %v326
    %v329 = vadd.f32 %v275, %v327
    %330 = vrot.lane.b32.xlu0 %v293, 96
    %v331 = vpop.permute.xlu0 %330
    %332 = vrot.lane.b32.xlu0 %v294, 96
    %v333 = vpop.permute.xlu0 %332
    %v334 = vld [vmem:[#allocation5 + $0xf] sm:$0x1]
    %v335 = vlaneseq
    %v336 = vshrl.u32 %v335, 7
    %v337 = vsub.s32 0, %v336
    %v338 = vrot.slane %v334, %v337
    %v339 = vmul.f32 %v331, %v338
    %v340 = vmul.f32 %v333, %v338
    %v341 = vadd.f32 %v287, %v339
    %v342 = vadd.f32 %v288, %v340
    %v343 = vld [vmem:[#allocation5 + $0x10] sm:$0x1]
    %v344 = vlaneseq
    %v345 = vshrl.u32 %v344, 7
    %v346 = vsub.s32 0, %v345
    %v347 = vrot.slane %v343, %v346
    %v348 = vmul.f32 %v79, %v347
    %v349 = vmul.f32 %v80, %v347
    %v350 = vadd.f32 %v302, %v348
    %v351 = vadd.f32 %v303, %v349
    %352 = vrot.lane.b32.xlu0 %v79, 32
    %v353 = vpop.permute.xlu0 %352
    %354 = vrot.lane.b32.xlu0 %v80, 32
    %v355 = vpop.permute.xlu0 %354
    %v356 = vld [vmem:[#allocation5 + $0x11] sm:$0x1]
    %v357 = vlaneseq
    %v358 = vshrl.u32 %v357, 7
    %v359 = vsub.s32 0, %v358
    %v360 = vrot.slane %v356, %v359
    %v361 = vmul.f32 %v353, %v360
    %v362 = vmul.f32 %v355, %v360
    %v363 = vadd.f32 %v315, %v361
    %v364 = vadd.f32 %v316, %v362
    %365 = vrot.lane.b32.xlu0 %v79, 64
    %v366 = vpop.permute.xlu0 %365
    %367 = vrot.lane.b32.xlu0 %v80, 64
    %v368 = vpop.permute.xlu0 %367
    %v369 = vld [vmem:[#allocation5 + $0x12] sm:$0x1]
    %v370 = vlaneseq
    %v371 = vshrl.u32 %v370, 7
    %v372 = vsub.s32 0, %v371
    %v373 = vrot.slane %v369, %v372
    %v374 = vmul.f32 %v366, %v373
    %v375 = vmul.f32 %v368, %v373
    %v376 = vadd.f32 %v328, %v374
    %v377 = vadd.f32 %v329, %v375
    %378 = vrot.lane.b32.xlu0 %v79, 96
    %v379 = vpop.permute.xlu0 %378
    %380 = vrot.lane.b32.xlu0 %v80, 96
    %v381 = vpop.permute.xlu0 %380
    %v382 = vld [vmem:[#allocation5 + $0x13] sm:$0x1]
    %v383 = vlaneseq
    %v384 = vshrl.u32 %v383, 7
    %v385 = vsub.s32 0, %v384
    %v386 = vrot.slane %v382, %v385
    %v387 = vmul.f32 %v379, %v386
    %v388 = vmul.f32 %v381, %v386
    %v389 = vadd.f32 %v341, %v387
    %v390 = vadd.f32 %v342, %v388
    %391 = vrot.lane.b32.xlu0 %v79, 127
    %v392 = vpop.permute.xlu0 %391
    %393 = vrot.lane.b32.xlu0 %v80, 127
    %v394 = vpop.permute.xlu0 %393
    %v395 = vsel %vm236, %v392, 0.0
    %v396 = vsel %vm236, %v394, 0.0
    %v397 = vld [vmem:[#allocation5 + $0x14] sm:$0x1]
    %v398 = vlaneseq
    %v399 = vshrl.u32 %v398, 7
    %v400 = vsub.s32 0, %v399
    %v401 = vrot.slane %v397, %v400
    %v402 = vmul.f32 %v395, %v401
    %v403 = vmul.f32 %v396, %v401
    %v404 = vadd.f32 %v350, %v402
    %v405 = vadd.f32 %v351, %v403
    %406 = vrot.lane.b32.xlu0 %v395, 32
    %v407 = vpop.permute.xlu0 %406
    %408 = vrot.lane.b32.xlu0 %v396, 32
    %v409 = vpop.permute.xlu0 %408
    %v410 = vld [vmem:[#allocation5 + $0x15] sm:$0x1]
    %v411 = vlaneseq
    %v412 = vshrl.u32 %v411, 7
    %v413 = vsub.s32 0, %v412
    %v414 = vrot.slane %v410, %v413
    %v415 = vmul.f32 %v407, %v414
    %v416 = vmul.f32 %v409, %v414
    %v417 = vadd.f32 %v363, %v415
    %v418 = vadd.f32 %v364, %v416
    %419 = vrot.lane.b32.xlu0 %v395, 64
    %v420 = vpop.permute.xlu0 %419
    %421 = vrot.lane.b32.xlu0 %v396, 64
    %v422 = vpop.permute.xlu0 %421
    %v423 = vld [vmem:[#allocation5 + $0x16] sm:$0x1]
    %v424 = vlaneseq
    %v425 = vshrl.u32 %v424, 7
    %v426 = vsub.s32 0, %v425
    %v427 = vrot.slane %v423, %v426
    %v428 = vmul.f32 %v420, %v427
    %v429 = vmul.f32 %v422, %v427
    %v430 = vadd.f32 %v376, %v428
    %v431 = vadd.f32 %v377, %v429
    %432 = vrot.lane.b32.xlu0 %v395, 96
    %v433 = vpop.permute.xlu0 %432
    %434 = vrot.lane.b32.xlu0 %v396, 96
    %v435 = vpop.permute.xlu0 %434
    %v436 = vld [vmem:[#allocation5 + $0x17] sm:$0x1]
    %v437 = vlaneseq
    %v438 = vshrl.u32 %v437, 7
    %v439 = vsub.s32 0, %v438
    %v440 = vrot.slane %v436, %v439
    %v441 = vmul.f32 %v433, %v440
    %v442 = vmul.f32 %v435, %v440
    %v443 = vadd.f32 %v389, %v441
    %v444 = vadd.f32 %v390, %v442
    %v445 = vrot.slane %v79, 1
    %v446 = vrot.slane %v80, 1
    %vm447 = vcmp.lt.s32.totalorder %v82, 7
    %v448 = vsel %vm447, %v445, %v446
    %v449 = vsel %vm447, %v446, %v445
    %v450 = vadd.s32 %v82, 1
    %v451 = vadd.s32 %v83, 1
    %vm452 = vcmp.ge.s32.totalorder %v450, 0
    %vm453 = vcmp.ge.s32.totalorder %v451, 0
    %vm454 = vcmp.le.s32.totalorder %v450, 15
    %vm455 = vcmp.le.s32.totalorder %v451, 15
    %vm456 = vmand %vm452, %vm454
    %vm457 = vmand %vm453, %vm455
    %458 = vrot.lane.b32.xlu0 %v448, 1
    %v459 = vpop.permute.xlu0 %458
    %460 = vrot.lane.b32.xlu0 %v449, 1
    %v461 = vpop.permute.xlu0 %460
    %v462 = vsel %vm456, 1, 0
    %v463 = vsel %vm457, 1, 0
    %vm464 = vcmp.eq.s32.totalorder %v462, 1
    %vm465 = vcmp.eq.s32.totalorder %v463, 1
    %vm466 = vmand %vm464, %vm124
    %vm467 = vmand %vm465, %vm124
    %v468 = vsel %vm466, %v459, 0.0
    %v469 = vsel %vm467, %v461, 0.0
    %v470 = vld [vmem:[#allocation5 + $0x18] sm:$0x1]
    %v471 = vlaneseq
    %v472 = vshrl.u32 %v471, 7
    %v473 = vsub.s32 0, %v472
    %v474 = vrot.slane %v470, %v473
    %v475 = vmul.f32 %v468, %v474
    %v476 = vmul.f32 %v469, %v474
    %v477 = vadd.f32 %v404, %v475
    %v478 = vadd.f32 %v405, %v476
    %479 = vrot.lane.b32.xlu0 %v468, 32
    %v480 = vpop.permute.xlu0 %479
    %481 = vrot.lane.b32.xlu0 %v469, 32
    %v482 = vpop.permute.xlu0 %481
    %v483 = vld [vmem:[#allocation5 + $0x19] sm:$0x1]
    %v484 = vlaneseq
    %v485 = vshrl.u32 %v484, 7
    %v486 = vsub.s32 0, %v485
    %v487 = vrot.slane %v483, %v486
    %v488 = vmul.f32 %v480, %v487
    %v489 = vmul.f32 %v482, %v487
    %v490 = vadd.f32 %v417, %v488
    %v491 = vadd.f32 %v418, %v489
    %492 = vrot.lane.b32.xlu0 %v468, 64
    %v493 = vpop.permute.xlu0 %492
    %494 = vrot.lane.b32.xlu0 %v469, 64
    %v495 = vpop.permute.xlu0 %494
    %v496 = vld [vmem:[#allocation5 + $0x1a] sm:$0x1]
    %v497 = vlaneseq
    %v498 = vshrl.u32 %v497, 7
    %v499 = vsub.s32 0, %v498
    %v500 = vrot.slane %v496, %v499
    %v501 = vmul.f32 %v493, %v500
    %v502 = vmul.f32 %v495, %v500
    %v503 = vadd.f32 %v430, %v501
    %v504 = vadd.f32 %v431, %v502
    %505 = vrot.lane.b32.xlu0 %v468, 96
    %v506 = vpop.permute.xlu0 %505
    %507 = vrot.lane.b32.xlu0 %v469, 96
    %v508 = vpop.permute.xlu0 %507
    %v509 = vld [vmem:[#allocation5 + $0x1b] sm:$0x1]
    %v510 = vlaneseq
    %v511 = vshrl.u32 %v510, 7
    %v512 = vsub.s32 0, %v511
    %v513 = vrot.slane %v509, %v512
    %v514 = vmul.f32 %v506, %v513
    %v515 = vmul.f32 %v508, %v513
    %v516 = vadd.f32 %v443, %v514
    %v517 = vadd.f32 %v444, %v515
    %v518 = vsel %vm464, %v448, 0.0
    %v519 = vsel %vm465, %v449, 0.0
    %v520 = vld [vmem:[#allocation5 + $0x1c] sm:$0x1]
    %v521 = vlaneseq
    %v522 = vshrl.u32 %v521, 7
    %v523 = vsub.s32 0, %v522
    %v524 = vrot.slane %v520, %v523
    %v525 = vmul.f32 %v518, %v524
    %v526 = vmul.f32 %v519, %v524
    %v527 = vadd.f32 %v477, %v525
    %v528 = vadd.f32 %v478, %v526
    %529 = vrot.lane.b32.xlu0 %v518, 32
    %v530 = vpop.permute.xlu0 %529
    %531 = vrot.lane.b32.xlu0 %v519, 32
    %v532 = vpop.permute.xlu0 %531
    %v533 = vld [vmem:[#allocation5 + $0x1d] sm:$0x1]
    %v534 = vlaneseq
    %v535 = vshrl.u32 %v534, 7
    %v536 = vsub.s32 0, %v535
    %v537 = vrot.slane %v533, %v536
    %v538 = vmul.f32 %v530, %v537
    %v539 = vmul.f32 %v532, %v537
    %v540 = vadd.f32 %v490, %v538
    %v541 = vadd.f32 %v491, %v539
    %542 = vrot.lane.b32.xlu0 %v518, 64
    %v543 = vpop.permute.xlu0 %542
    %544 = vrot.lane.b32.xlu0 %v519, 64
    %v545 = vpop.permute.xlu0 %544
    %v546 = vld [vmem:[#allocation5 + $0x1e] sm:$0x1]
    %v547 = vlaneseq
    %v548 = vshrl.u32 %v547, 7
    %v549 = vsub.s32 0, %v548
    %v550 = vrot.slane %v546, %v549
    %v551 = vmul.f32 %v543, %v550
    %v552 = vmul.f32 %v545, %v550
    %v553 = vadd.f32 %v503, %v551
    %v554 = vadd.f32 %v504, %v552
    %555 = vrot.lane.b32.xlu0 %v518, 96
    %v556 = vpop.permute.xlu0 %555
    %557 = vrot.lane.b32.xlu0 %v519, 96
    %v558 = vpop.permute.xlu0 %557
    %v559 = vld [vmem:[#allocation5 + $0x1f] sm:$0x1]
    %v560 = vlaneseq
    %v561 = vshrl.u32 %v560, 7
    %v562 = vsub.s32 0, %v561
    %v563 = vrot.slane %v559, %v562
    %v564 = vmul.f32 %v556, %v563
    %v565 = vmul.f32 %v558, %v563
    %v566 = vadd.f32 %v516, %v564
    %v567 = vadd.f32 %v517, %v565
    %568 = vrot.lane.b32.xlu0 %v448, 127
    %v569 = vpop.permute.xlu0 %568
    %570 = vrot.lane.b32.xlu0 %v449, 127
    %v571 = vpop.permute.xlu0 %570
    %vm572 = vmand %vm464, %vm236
    %vm573 = vmand %vm465, %vm236
    %v574 = vsel %vm572, %v569, 0.0
    %v575 = vsel %vm573, %v571, 0.0
    %v576 = vld [vmem:[#allocation5 + $0x20] sm:$0x1]
    %v577 = vlaneseq
    %v578 = vshrl.u32 %v577, 7
    %v579 = vsub.s32 0, %v578
    %v580 = vrot.slane %v576, %v579
    %v581 = vmul.f32 %v574, %v580
    %v582 = vmul.f32 %v575, %v580
    %v583 = vadd.f32 %v527, %v581
    %v584 = vadd.f32 %v528, %v582
    %585 = vrot.lane.b32.xlu0 %v574, 32
    %v586 = vpop.permute.xlu0 %585
    %587 = vrot.lane.b32.xlu0 %v575, 32
    %v588 = vpop.permute.xlu0 %587
    %v589 = vld [vmem:[#allocation5 + $0x21] sm:$0x1]
    %v590 = vlaneseq
    %v591 = vshrl.u32 %v590, 7
    %v592 = vsub.s32 0, %v591
    %v593 = vrot.slane %v589, %v592
    %v594 = vmul.f32 %v586, %v593
    %v595 = vmul.f32 %v588, %v593
    %v596 = vadd.f32 %v540, %v594
    %v597 = vadd.f32 %v541, %v595
    %598 = vrot.lane.b32.xlu0 %v574, 64
    %v599 = vpop.permute.xlu0 %598
    %600 = vrot.lane.b32.xlu0 %v575, 64
    %v601 = vpop.permute.xlu0 %600
    %v602 = vld [vmem:[#allocation5 + $0x22] sm:$0x1]
    %v603 = vlaneseq
    %v604 = vshrl.u32 %v603, 7
    %v605 = vsub.s32 0, %v604
    %v606 = vrot.slane %v602, %v605
    %v607 = vmul.f32 %v599, %v606
    %v608 = vmul.f32 %v601, %v606
    %v609 = vadd.f32 %v553, %v607
    %v610 = vadd.f32 %v554, %v608
    %611 = vrot.lane.b32.xlu0 %v574, 96
    %v612 = vpop.permute.xlu0 %611
    %613 = vrot.lane.b32.xlu0 %v575, 96
    %v614 = vpop.permute.xlu0 %613
    %v615 = vld [vmem:[#allocation5 + $0x23] sm:$0x1]
    %v616 = vlaneseq
    %v617 = vshrl.u32 %v616, 7
    %v618 = vsub.s32 0, %v617
    %v619 = vrot.slane %v615, %v618
    %v620 = vmul.f32 %v612, %v619
    %v621 = vmul.f32 %v614, %v619
    %v622 = vadd.f32 %v566, %v620
    %v623 = vadd.f32 %v567, %v621
    %v624 = vadd.f32 %v583, %v596
    %v625 = vadd.f32 %v584, %v597
    %v626 = vadd.f32 %v624, %v609
    %v627 = vadd.f32 %v625, %v610
    %v628 = vadd.f32 %v626, %v622
    %v629 = vadd.f32 %v627, %v623
    %v630 = vadd.f32 %v628, %v629
    %v631 = vrot.slane %v630, 4
    %v632 = vadd.f32 %v630, %v631
    %v633 = vrot.slane %v632, 2
    %v634 = vadd.f32 %v632, %v633
    %v635 = vrot.slane %v634, 1
    %v636 = vadd.f32 %v634, %v635
    %v637 = vmul.f32 %v628, %v628
    %v638 = vmul.f32 %v629, %v629
    %v639 = vadd.f32 %v637, %v638
    %v640 = vrot.slane %v639, 4
    %v641 = vadd.f32 %v639, %v640
    %v642 = vrot.slane %v641, 2
    %v643 = vadd.f32 %v641, %v642
    %v644 = vrot.slane %v643, 1
    %v645 = vadd.f32 %v643, %v644
    %v646 = vld [vmem:[#allocation8] sm:$0xff]
    %v647 = vld [vmem:[#allocation8 + $0x8] sm:$0xff]
    %v648 = vld [vmem:[#allocation8 + $0x10] sm:$0xff]
    %v649 = vld [vmem:[#allocation8 + $0x18] sm:$0xff]
    %v650 = vld [vmem:[#allocation8 + $0x20] sm:$0xff]
    %v651 = vld [vmem:[#allocation8 + $0x28] sm:$0xff]
    %v652 = vld [vmem:[#allocation8 + $0x30] sm:$0xff]
    %v653 = vld [vmem:[#allocation8 + $0x38] sm:$0xff]
    %v654 = vld [vmem:[#allocation8 + $0x40] sm:$0xff]
    %v655 = vld [vmem:[#allocation8 + $0x48] sm:$0xff]
    %v656 = vld [vmem:[#allocation8 + $0x50] sm:$0xff]
    %v657 = vld [vmem:[#allocation8 + $0x58] sm:$0xff]
    %v658 = vld [vmem:[#allocation8 + $0x60] sm:$0xff]
    %v659 = vld [vmem:[#allocation8 + $0x68] sm:$0xff]
    %v660 = vld [vmem:[#allocation8 + $0x70] sm:$0xff]
    %v661 = vld [vmem:[#allocation8 + $0x78] sm:$0xff]
    %662 = vmatprep.subr.mxu0 0.0
    %663 = vmatpush1.msra.mxu0 %v646
    %664 = vmatprep.subr.mxu0 0.0
    %665 = vmatpush1.msra.mxu0 %v647
    %666 = vmatprep.subr.mxu0 0.0
    %667 = vmatpush1.msra.mxu0 %v648
    %668 = vmatprep.subr.mxu0 0.0
    %669 = vmatpush1.msra.mxu0 %v649
    %670 = vmatprep.subr.mxu0 0.0
    %671 = vmatpush1.msra.mxu0 %v650
    %672 = vmatprep.subr.mxu0 0.0
    %673 = vmatpush1.msra.mxu0 %v651
    %674 = vmatprep.subr.mxu0 0.0
    %675 = vmatpush1.msra.mxu0 %v652
    %676 = vmatprep.subr.mxu0 0.0
    %677 = vmatpush1.msra.mxu0 %v653
    %678 = vmatprep.subr.mxu0 0.0
    %679 = vmatpush1.msra.mxu0 %v654
    %680 = vmatprep.subr.mxu0 0.0
    %681 = vmatpush1.msra.mxu0 %v655
    %682 = vmatprep.subr.mxu0 0.0
    %683 = vmatpush1.msra.mxu0 %v656
    %684 = vmatprep.subr.mxu0 0.0
    %685 = vmatpush1.msra.mxu0 %v657
    %686 = vmatprep.subr.mxu0 0.0
    %687 = vmatpush1.msra.mxu0 %v658
    %688 = vmatprep.subr.mxu0 0.0
    %689 = vmatpush1.msra.mxu0 %v659
    %690 = vmatprep.subr.mxu0 0.0
    %691 = vmatpush1.msra.mxu0 %v660
    %692 = vmatprep.subr.mxu0 0.0
    %693 = vmatpush1.msra.mxu0 %v661
    %694 = vmatprep.subr.mxu0 0.0
    %695 = vmatpush1.msra.mxu0 0.0
    %696 = vmatprep.subr.mxu0 0.0
    %697 = vmatpush1.msra.mxu0 0.0
    %698 = vmatprep.subr.mxu0 0.0
    %699 = vmatpush1.msra.mxu0 0.0
    %700 = vmatprep.subr.mxu0 0.0
    %701 = vmatpush1.msra.mxu0 0.0
    %702 = vmatprep.subr.mxu0 0.0
    %703 = vmatpush1.msra.mxu0 0.0
    %704 = vmatprep.subr.mxu0 0.0
    %705 = vmatpush1.msra.mxu0 0.0
    %706 = vmatprep.subr.mxu0 0.0
    %707 = vmatpush1.msra.mxu0 0.0
    %708 = vmatprep.subr.mxu0 0.0
    %709 = vmatpush1.msra.mxu0 0.0
    %710 = vmatprep.subr.mxu0 0.0
    %711 = vmatpush1.msra.mxu0 0.0
    %712 = vmatprep.subr.mxu0 0.0
    %713 = vmatpush1.msra.mxu0 0.0
    %714 = vmatprep.subr.mxu0 0.0
    %715 = vmatpush1.msra.mxu0 0.0
    %716 = vmatprep.subr.mxu0 0.0
    %717 = vmatpush1.msra.mxu0 0.0
    %718 = vmatprep.subr.mxu0 0.0
    %719 = vmatpush1.msra.mxu0 0.0
    %720 = vmatprep.subr.mxu0 0.0
    %721 = vmatpush1.msra.mxu0 0.0
    %722 = vmatprep.subr.mxu0 0.0
    %723 = vmatpush1.msra.mxu0 0.0
    %724 = vmatprep.subr.mxu0 0.0
    %725 = vmatpush1.msra.mxu0 0.0
    %726 = vmatprep.mubr.f32.mxu0 0.0
    %727 = vmatmul.mubr.f32.gmra.mrb[0].mxu0 %v636
    %v728 = vpop.f32.mrb[0].mxu0
    %v729 = vadd.f32 0.0, %v728
    %v730 = vpop.f32.mrb[0].mxu0
    %731 = vdwg.mxu0
    %v732 = vmul.f32 %v729, 0.001953125
    %733 = vmatprep.subr.mxu0 0.0
    %734 = vmatpush1.msra.mxu0 %v646
    %735 = vmatprep.subr.mxu0 0.0
    %736 = vmatpush1.msra.mxu0 %v647
    %737 = vmatprep.subr.mxu0 0.0
    %738 = vmatpush1.msra.mxu0 %v648
    %739 = vmatprep.subr.mxu0 0.0
    %740 = vmatpush1.msra.mxu0 %v649
    %741 = vmatprep.subr.mxu0 0.0
    %742 = vmatpush1.msra.mxu0 %v650
    %743 = vmatprep.subr.mxu0 0.0
    %744 = vmatpush1.msra.mxu0 %v651
    %745 = vmatprep.subr.mxu0 0.0
    %746 = vmatpush1.msra.mxu0 %v652
    %747 = vmatprep.subr.mxu0 0.0
    %748 = vmatpush1.msra.mxu0 %v653
    %749 = vmatprep.subr.mxu0 0.0
    %750 = vmatpush1.msra.mxu0 %v654
    %751 = vmatprep.subr.mxu0 0.0
    %752 = vmatpush1.msra.mxu0 %v655
    %753 = vmatprep.subr.mxu0 0.0
    %754 = vmatpush1.msra.mxu0 %v656
    %755 = vmatprep.subr.mxu0 0.0
    %756 = vmatpush1.msra.mxu0 %v657
    %757 = vmatprep.subr.mxu0 0.0
    %758 = vmatpush1.msra.mxu0 %v658
    %759 = vmatprep.subr.mxu0 0.0
    %760 = vmatpush1.msra.mxu0 %v659
    %761 = vmatprep.subr.mxu0 0.0
    %762 = vmatpush1.msra.mxu0 %v660
    %763 = vmatprep.subr.mxu0 0.0
    %764 = vmatpush1.msra.mxu0 %v661
    %765 = vmatprep.subr.mxu0 0.0
    %766 = vmatpush1.msra.mxu0 0.0
    %767 = vmatprep.subr.mxu0 0.0
    %768 = vmatpush1.msra.mxu0 0.0
    %769 = vmatprep.subr.mxu0 0.0
    %770 = vmatpush1.msra.mxu0 0.0
    %771 = vmatprep.subr.mxu0 0.0
    %772 = vmatpush1.msra.mxu0 0.0
    %773 = vmatprep.subr.mxu0 0.0
    %774 = vmatpush1.msra.mxu0 0.0
    %775 = vmatprep.subr.mxu0 0.0
    %776 = vmatpush1.msra.mxu0 0.0
    %777 = vmatprep.subr.mxu0 0.0
    %778 = vmatpush1.msra.mxu0 0.0
    %779 = vmatprep.subr.mxu0 0.0
    %780 = vmatpush1.msra.mxu0 0.0
    %781 = vmatprep.subr.mxu0 0.0
    %782 = vmatpush1.msra.mxu0 0.0
    %783 = vmatprep.subr.mxu0 0.0
    %784 = vmatpush1.msra.mxu0 0.0
    %785 = vmatprep.subr.mxu0 0.0
    %786 = vmatpush1.msra.mxu0 0.0
    %787 = vmatprep.subr.mxu0 0.0
    %788 = vmatpush1.msra.mxu0 0.0
    %789 = vmatprep.subr.mxu0 0.0
    %790 = vmatpush1.msra.mxu0 0.0
    %791 = vmatprep.subr.mxu0 0.0
    %792 = vmatpush1.msra.mxu0 0.0
    %793 = vmatprep.subr.mxu0 0.0
    %794 = vmatpush1.msra.mxu0 0.0
    %795 = vmatprep.subr.mxu0 0.0
    %796 = vmatpush1.msra.mxu0 0.0
    %797 = vmatprep.mubr.f32.mxu0 0.0
    %798 = vmatmul.mubr.f32.gmra.mrb[0].mxu0 %v645
    %v799 = vpop.f32.mrb[0].mxu0
    %v800 = vadd.f32 0.0, %v799
    %v801 = vpop.f32.mrb[0].mxu0
    %802 = vdwg.mxu0
    %v803 = vmul.f32 %v800, 0.001953125
    %v804 = vmul.f32 %v732, %v732
    %v805 = vsub.f32 %v803, %v804
    %v806 = vadd.f32 %v805, 1e-05
    %v807 = vrsqrt.pop %v806
    %v808 = vld [vmem:[%s3] sm:$0x1]
    %v809 = vld [vmem:[%s3 + $0x1] sm:$0x1]
    %v810 = vlaneseq
    %v811 = vshrl.u32 %v810, 7
    %v812 = vsub.s32 0, %v811
    %v813 = vrot.slane %v732, %v812
    %v814 = vsub.f32 %v628, %v813
    %v815 = vsub.f32 %v629, %v813
    %v816 = vmul.f32 %v807, %v808
    %v817 = vlaneseq
    %v818 = vshrl.u32 %v817, 7
    %v819 = vsub.s32 0, %v818
    %v820 = vrot.slane %v816, %v819
    %v821 = vmul.f32 %v814, %v820
    %v822 = vmul.f32 %v815, %v820
    %v823 = vlaneseq
    %v824 = vshrl.u32 %v823, 7
    %v825 = vsub.s32 0, %v824
    %v826 = vrot.slane %v809, %v825
    %v827 = vadd.f32 %v821, %v826
    %v828 = vadd.f32 %v822, %v826
    %v829 = vmax.f32 %v827, 0.0
    %v830 = vmax.f32 %v828, 0.0
    %v831 = vrot.slane %v829, 7
    %v832 = vrot.slane %v830, 7
    %v833 = vsel %vm100, %v831, %v832
    %v834 = vsel %vm100, %v832, %v831
    %835 = vrot.lane.b32.xlu0 %v834, 1
    %v836 = vpop.permute.xlu0 %835
    %837 = vrot.lane.b32.xlu0 %v833, 1
    %v838 = vpop.permute.xlu0 %837
    %v839 = vsel %vm125, %v836, 0.0
    %v840 = vsel %vm126, %v838, 0.0
    %v841 = vld [vmem:[#allocation7] sm:$0x1]
    %v842 = vlaneseq
    %v843 = vshrl.u32 %v842, 7
    %v844 = vsub.s32 0, %v843
    %v845 = vrot.slane %v841, %v844
    %v846 = vmul.f32 %v839, %v845
    %v847 = vmul.f32 %v840, %v845
    %v848 = vadd.f32 %v846, 0.0
    %v849 = vadd.f32 %v847, 0.0
    %850 = vrot.lane.b32.xlu0 %v839, 32
    %v851 = vpop.permute.xlu0 %850
    %852 = vrot.lane.b32.xlu0 %v840, 32
    %v853 = vpop.permute.xlu0 %852
    %v854 = vld [vmem:[#allocation7 + $0x1] sm:$0x1]
    %v855 = vlaneseq
    %v856 = vshrl.u32 %v855, 7
    %v857 = vsub.s32 0, %v856
    %v858 = vrot.slane %v854, %v857
    %v859 = vmul.f32 %v851, %v858
    %v860 = vmul.f32 %v853, %v858
    %v861 = vadd.f32 %v859, 0.0
    %v862 = vadd.f32 %v860, 0.0
    %863 = vrot.lane.b32.xlu0 %v839, 64
    %v864 = vpop.permute.xlu0 %863
    %865 = vrot.lane.b32.xlu0 %v840, 64
    %v866 = vpop.permute.xlu0 %865
    %v867 = vld [vmem:[#allocation7 + $0x2] sm:$0x1]
    %v868 = vlaneseq
    %v869 = vshrl.u32 %v868, 7
    %v870 = vsub.s32 0, %v869
    %v871 = vrot.slane %v867, %v870
    %v872 = vmul.f32 %v864, %v871
    %v873 = vmul.f32 %v866, %v871
    %v874 = vadd.f32 %v872, 0.0
    %v875 = vadd.f32 %v873, 0.0
    %876 = vrot.lane.b32.xlu0 %v839, 96
    %v877 = vpop.permute.xlu0 %876
    %878 = vrot.lane.b32.xlu0 %v840, 96
    %v879 = vpop.permute.xlu0 %878
    %v880 = vld [vmem:[#allocation7 + $0x3] sm:$0x1]
    %v881 = vlaneseq
    %v882 = vshrl.u32 %v881, 7
    %v883 = vsub.s32 0, %v882
    %v884 = vrot.slane %v880, %v883
    %v885 = vmul.f32 %v877, %v884
    %v886 = vmul.f32 %v879, %v884
    %v887 = vadd.f32 %v885, 0.0
    %v888 = vadd.f32 %v886, 0.0
    %v889 = vsel %vm121, %v834, 0.0
    %v890 = vsel %vm122, %v833, 0.0
    %v891 = vld [vmem:[#allocation7 + $0x4] sm:$0x1]
    %v892 = vlaneseq
    %v893 = vshrl.u32 %v892, 7
    %v894 = vsub.s32 0, %v893
    %v895 = vrot.slane %v891, %v894
    %v896 = vmul.f32 %v889, %v895
    %v897 = vmul.f32 %v890, %v895
    %v898 = vadd.f32 %v848, %v896
    %v899 = vadd.f32 %v849, %v897
    %900 = vrot.lane.b32.xlu0 %v889, 32
    %v901 = vpop.permute.xlu0 %900
    %902 = vrot.lane.b32.xlu0 %v890, 32
    %v903 = vpop.permute.xlu0 %902
    %v904 = vld [vmem:[#allocation7 + $0x5] sm:$0x1]
    %v905 = vlaneseq
    %v906 = vshrl.u32 %v905, 7
    %v907 = vsub.s32 0, %v906
    %v908 = vrot.slane %v904, %v907
    %v909 = vmul.f32 %v901, %v908
    %v910 = vmul.f32 %v903, %v908
    %v911 = vadd.f32 %v861, %v909
    %v912 = vadd.f32 %v862, %v910
    %913 = vrot.lane.b32.xlu0 %v889, 64
    %v914 = vpop.permute.xlu0 %913
    %915 = vrot.lane.b32.xlu0 %v890, 64
    %v916 = vpop.permute.xlu0 %915
    %v917 = vld [vmem:[#allocation7 + $0x6] sm:$0x1]
    %v918 = vlaneseq
    %v919 = vshrl.u32 %v918, 7
    %v920 = vsub.s32 0, %v919
    %v921 = vrot.slane %v917, %v920
    %v922 = vmul.f32 %v914, %v921
    %v923 = vmul.f32 %v916, %v921
    %v924 = vadd.f32 %v874, %v922
    %v925 = vadd.f32 %v875, %v923
    %926 = vrot.lane.b32.xlu0 %v889, 96
    %v927 = vpop.permute.xlu0 %926
    %928 = vrot.lane.b32.xlu0 %v890, 96
    %v929 = vpop.permute.xlu0 %928
    %v930 = vld [vmem:[#allocation7 + $0x7] sm:$0x1]
    %v931 = vlaneseq
    %v932 = vshrl.u32 %v931, 7
    %v933 = vsub.s32 0, %v932
    %v934 = vrot.slane %v930, %v933
    %v935 = vmul.f32 %v927, %v934
    %v936 = vmul.f32 %v929, %v934
    %v937 = vadd.f32 %v887, %v935
    %v938 = vadd.f32 %v888, %v936
    %939 = vrot.lane.b32.xlu0 %v834, 127
    %v940 = vpop.permute.xlu0 %939
    %941 = vrot.lane.b32.xlu0 %v833, 127
    %v942 = vpop.permute.xlu0 %941
    %v943 = vsel %vm237, %v940, 0.0
    %v944 = vsel %vm238, %v942, 0.0
    %v945 = vld [vmem:[#allocation7 + $0x8] sm:$0x1]
    %v946 = vlaneseq
    %v947 = vshrl.u32 %v946, 7
    %v948 = vsub.s32 0, %v947
    %v949 = vrot.slane %v945, %v948
    %v950 = vmul.f32 %v943, %v949
    %v951 = vmul.f32 %v944, %v949
    %v952 = vadd.f32 %v898, %v950
    %v953 = vadd.f32 %v899, %v951
    %954 = vrot.lane.b32.xlu0 %v943, 32
    %v955 = vpop.permute.xlu0 %954
    %956 = vrot.lane.b32.xlu0 %v944, 32
    %v957 = vpop.permute.xlu0 %956
    %v958 = vld [vmem:[#allocation7 + $0x9] sm:$0x1]
    %v959 = vlaneseq
    %v960 = vshrl.u32 %v959, 7
    %v961 = vsub.s32 0, %v960
    %v962 = vrot.slane %v958, %v961
    %v963 = vmul.f32 %v955, %v962
    %v964 = vmul.f32 %v957, %v962
    %v965 = vadd.f32 %v911, %v963
    %v966 = vadd.f32 %v912, %v964
    %967 = vrot.lane.b32.xlu0 %v943, 64
    %v968 = vpop.permute.xlu0 %967
    %969 = vrot.lane.b32.xlu0 %v944, 64
    %v970 = vpop.permute.xlu0 %969
    %v971 = vld [vmem:[#allocation7 + $0xa] sm:$0x1]
    %v972 = vlaneseq
    %v973 = vshrl.u32 %v972, 7
    %v974 = vsub.s32 0, %v973
    %v975 = vrot.slane %v971, %v974
    %v976 = vmul.f32 %v968, %v975
    %v977 = vmul.f32 %v970, %v975
    %v978 = vadd.f32 %v924, %v976
    %v979 = vadd.f32 %v925, %v977
    %980 = vrot.lane.b32.xlu0 %v943, 96
    %v981 = vpop.permute.xlu0 %980
    %982 = vrot.lane.b32.xlu0 %v944, 96
    %v983 = vpop.permute.xlu0 %982
    %v984 = vld [vmem:[#allocation7 + $0xb] sm:$0x1]
    %v985 = vlaneseq
    %v986 = vshrl.u32 %v985, 7
    %v987 = vsub.s32 0, %v986
    %v988 = vrot.slane %v984, %v987
    %v989 = vmul.f32 %v981, %v988
    %v990 = vmul.f32 %v983, %v988
    %v991 = vadd.f32 %v937, %v989
    %v992 = vadd.f32 %v938, %v990
    %993 = vrot.lane.b32.xlu0 %v829, 1
    %v994 = vpop.permute.xlu0 %993
    %995 = vrot.lane.b32.xlu0 %v830, 1
    %v996 = vpop.permute.xlu0 %995
    %v997 = vsel %vm124, %v994, 0.0
    %v998 = vsel %vm124, %v996, 0.0
    %v999 = vld [vmem:[#allocation7 + $0xc] sm:$0x1]
    %v1000 = vlaneseq
    %v1001 = vshrl.u32 %v1000, 7
    %v1002 = vsub.s32 0, %v1001
    %v1003 = vrot.slane %v999, %v1002
    %v1004 = vmul.f32 %v997, %v1003
    %v1005 = vmul.f32 %v998, %v1003
    %v1006 = vadd.f32 %v952, %v1004
    %v1007 = vadd.f32 %v953, %v1005
    %1008 = vrot.lane.b32.xlu0 %v997, 32
    %v1009 = vpop.permute.xlu0 %1008
    %1010 = vrot.lane.b32.xlu0 %v998, 32
    %v1011 = vpop.permute.xlu0 %1010
    %v1012 = vld [vmem:[#allocation7 + $0xd] sm:$0x1]
    %v1013 = vlaneseq
    %v1014 = vshrl.u32 %v1013, 7
    %v1015 = vsub.s32 0, %v1014
    %v1016 = vrot.slane %v1012, %v1015
    %v1017 = vmul.f32 %v1009, %v1016
    %v1018 = vmul.f32 %v1011, %v1016
    %v1019 = vadd.f32 %v965, %v1017
    %v1020 = vadd.f32 %v966, %v1018
    %1021 = vrot.lane.b32.xlu0 %v997, 64
    %v1022 = vpop.permute.xlu0 %1021
    %1023 = vrot.lane.b32.xlu0 %v998, 64
    %v1024 = vpop.permute.xlu0 %1023
    %v1025 = vld [vmem:[#allocation7 + $0xe] sm:$0x1]
    %v1026 = vlaneseq
    %v1027 = vshrl.u32 %v1026, 7
    %v1028 = vsub.s32 0, %v1027
    %v1029 = vrot.slane %v1025, %v1028
    %v1030 = vmul.f32 %v1022, %v1029
    %v1031 = vmul.f32 %v1024, %v1029
    %v1032 = vadd.f32 %v978, %v1030
    %v1033 = vadd.f32 %v979, %v1031
    %1034 = vrot.lane.b32.xlu0 %v997, 96
    %v1035 = vpop.permute.xlu0 %1034
    %1036 = vrot.lane.b32.xlu0 %v998, 96
    %v1037 = vpop.permute.xlu0 %1036
    %v1038 = vld [vmem:[#allocation7 + $0xf] sm:$0x1]
    %v1039 = vlaneseq
    %v1040 = vshrl.u32 %v1039, 7
    %v1041 = vsub.s32 0, %v1040
    %v1042 = vrot.slane %v1038, %v1041
    %v1043 = vmul.f32 %v1035, %v1042
    %v1044 = vmul.f32 %v1037, %v1042
    %v1045 = vadd.f32 %v991, %v1043
    %v1046 = vadd.f32 %v992, %v1044
    %v1047 = vld [vmem:[#allocation7 + $0x10] sm:$0x1]
    %v1048 = vlaneseq
    %v1049 = vshrl.u32 %v1048, 7
    %v1050 = vsub.s32 0, %v1049
    %v1051 = vrot.slane %v1047, %v1050
    %v1052 = vmul.f32 %v829, %v1051
    %v1053 = vmul.f32 %v830, %v1051
    %v1054 = vadd.f32 %v1006, %v1052
    %v1055 = vadd.f32 %v1007, %v1053
    %1056 = vrot.lane.b32.xlu0 %v829, 32
    %v1057 = vpop.permute.xlu0 %1056
    %1058 = vrot.lane.b32.xlu0 %v830, 32
    %v1059 = vpop.permute.xlu0 %1058
    %v1060 = vld [vmem:[#allocation7 + $0x11] sm:$0x1]
    %v1061 = vlaneseq
    %v1062 = vshrl.u32 %v1061, 7
    %v1063 = vsub.s32 0, %v1062
    %v1064 = vrot.slane %v1060, %v1063
    %v1065 = vmul.f32 %v1057, %v1064
    %v1066 = vmul.f32 %v1059, %v1064
    %v1067 = vadd.f32 %v1019, %v1065
    %v1068 = vadd.f32 %v1020, %v1066
    %1069 = vrot.lane.b32.xlu0 %v829, 64
    %v1070 = vpop.permute.xlu0 %1069
    %1071 = vrot.lane.b32.xlu0 %v830, 64
    %v1072 = vpop.permute.xlu0 %1071
    %v1073 = vld [vmem:[#allocation7 + $0x12] sm:$0x1]
    %v1074 = vlaneseq
    %v1075 = vshrl.u32 %v1074, 7
    %v1076 = vsub.s32 0, %v1075
    %v1077 = vrot.slane %v1073, %v1076
    %v1078 = vmul.f32 %v1070, %v1077
    %v1079 = vmul.f32 %v1072, %v1077
    %v1080 = vadd.f32 %v1032, %v1078
    %v1081 = vadd.f32 %v1033, %v1079
    %1082 = vrot.lane.b32.xlu0 %v829, 96
    %v1083 = vpop.permute.xlu0 %1082
    %1084 = vrot.lane.b32.xlu0 %v830, 96
    %v1085 = vpop.permute.xlu0 %1084
    %v1086 = vld [vmem:[#allocation7 + $0x13] sm:$0x1]
    %v1087 = vlaneseq
    %v1088 = vshrl.u32 %v1087, 7
    %v1089 = vsub.s32 0, %v1088
    %v1090 = vrot.slane %v1086, %v1089
    %v1091 = vmul.f32 %v1083, %v1090
    %v1092 = vmul.f32 %v1085, %v1090
    %v1093 = vadd.f32 %v1045, %v1091
    %v1094 = vadd.f32 %v1046, %v1092
    %1095 = vrot.lane.b32.xlu0 %v829, 127
    %v1096 = vpop.permute.xlu0 %1095
    %1097 = vrot.lane.b32.xlu0 %v830, 127
    %v1098 = vpop.permute.xlu0 %1097
    %v1099 = vsel %vm236, %v1096, 0.0
    %v1100 = vsel %vm236, %v1098, 0.0
    %v1101 = vld [vmem:[#allocation7 + $0x14] sm:$0x1]
    %v1102 = vlaneseq
    %v1103 = vshrl.u32 %v1102, 7
    %v1104 = vsub.s32 0, %v1103
    %v1105 = vrot.slane %v1101, %v1104
    %v1106 = vmul.f32 %v1099, %v1105
    %v1107 = vmul.f32 %v1100, %v1105
    %v1108 = vadd.f32 %v1054, %v1106
    %v1109 = vadd.f32 %v1055, %v1107
    %1110 = vrot.lane.b32.xlu0 %v1099, 32
    %v1111 = vpop.permute.xlu0 %1110
    %1112 = vrot.lane.b32.xlu0 %v1100, 32
    %v1113 = vpop.permute.xlu0 %1112
    %v1114 = vld [vmem:[#allocation7 + $0x15] sm:$0x1]
    %v1115 = vlaneseq
    %v1116 = vshrl.u32 %v1115, 7
    %v1117 = vsub.s32 0, %v1116
    %v1118 = vrot.slane %v1114, %v1117
    %v1119 = vmul.f32 %v1111, %v1118
    %v1120 = vmul.f32 %v1113, %v1118
    %v1121 = vadd.f32 %v1067, %v1119
    %v1122 = vadd.f32 %v1068, %v1120
    %1123 = vrot.lane.b32.xlu0 %v1099, 64
    %v1124 = vpop.permute.xlu0 %1123
    %1125 = vrot.lane.b32.xlu0 %v1100, 64
    %v1126 = vpop.permute.xlu0 %1125
    %v1127 = vld [vmem:[#allocation7 + $0x16] sm:$0x1]
    %v1128 = vlaneseq
    %v1129 = vshrl.u32 %v1128, 7
    %v1130 = vsub.s32 0, %v1129
    %v1131 = vrot.slane %v1127, %v1130
    %v1132 = vmul.f32 %v1124, %v1131
    %v1133 = vmul.f32 %v1126, %v1131
    %v1134 = vadd.f32 %v1080, %v1132
    %v1135 = vadd.f32 %v1081, %v1133
    %1136 = vrot.lane.b32.xlu0 %v1099, 96
    %v1137 = vpop.permute.xlu0 %1136
    %1138 = vrot.lane.b32.xlu0 %v1100, 96
    %v1139 = vpop.permute.xlu0 %1138
    %v1140 = vld [vmem:[#allocation7 + $0x17] sm:$0x1]
    %v1141 = vlaneseq
    %v1142 = vshrl.u32 %v1141, 7
    %v1143 = vsub.s32 0, %v1142
    %v1144 = vrot.slane %v1140, %v1143
    %v1145 = vmul.f32 %v1137, %v1144
    %v1146 = vmul.f32 %v1139, %v1144
    %v1147 = vadd.f32 %v1093, %v1145
    %v1148 = vadd.f32 %v1094, %v1146
    %v1149 = vrot.slane %v829, 1
    %v1150 = vrot.slane %v830, 1
    %v1151 = vsel %vm447, %v1149, %v1150
    %v1152 = vsel %vm447, %v1150, %v1149
    %1153 = vrot.lane.b32.xlu0 %v1151, 1
    %v1154 = vpop.permute.xlu0 %1153
    %1155 = vrot.lane.b32.xlu0 %v1152, 1
    %v1156 = vpop.permute.xlu0 %1155
    %v1157 = vsel %vm466, %v1154, 0.0
    %v1158 = vsel %vm467, %v1156, 0.0
    %v1159 = vld [vmem:[#allocation7 + $0x18] sm:$0x1]
    %v1160 = vlaneseq
    %v1161 = vshrl.u32 %v1160, 7
    %v1162 = vsub.s32 0, %v1161
    %v1163 = vrot.slane %v1159, %v1162
    %v1164 = vmul.f32 %v1157, %v1163
    %v1165 = vmul.f32 %v1158, %v1163
    %v1166 = vadd.f32 %v1108, %v1164
    %v1167 = vadd.f32 %v1109, %v1165
    %1168 = vrot.lane.b32.xlu0 %v1157, 32
    %v1169 = vpop.permute.xlu0 %1168
    %1170 = vrot.lane.b32.xlu0 %v1158, 32
    %v1171 = vpop.permute.xlu0 %1170
    %v1172 = vld [vmem:[#allocation7 + $0x19] sm:$0x1]
    %v1173 = vlaneseq
    %v1174 = vshrl.u32 %v1173, 7
    %v1175 = vsub.s32 0, %v1174
    %v1176 = vrot.slane %v1172, %v1175
    %v1177 = vmul.f32 %v1169, %v1176
    %v1178 = vmul.f32 %v1171, %v1176
    %v1179 = vadd.f32 %v1121, %v1177
    %v1180 = vadd.f32 %v1122, %v1178
    %1181 = vrot.lane.b32.xlu0 %v1157, 64
    %v1182 = vpop.permute.xlu0 %1181
    %1183 = vrot.lane.b32.xlu0 %v1158, 64
    %v1184 = vpop.permute.xlu0 %1183
    %v1185 = vld [vmem:[#allocation7 + $0x1a] sm:$0x1]
    %v1186 = vlaneseq
    %v1187 = vshrl.u32 %v1186, 7
    %v1188 = vsub.s32 0, %v1187
    %v1189 = vrot.slane %v1185, %v1188
    %v1190 = vmul.f32 %v1182, %v1189
    %v1191 = vmul.f32 %v1184, %v1189
    %v1192 = vadd.f32 %v1134, %v1190
    %v1193 = vadd.f32 %v1135, %v1191
    %1194 = vrot.lane.b32.xlu0 %v1157, 96
    %v1195 = vpop.permute.xlu0 %1194
    %1196 = vrot.lane.b32.xlu0 %v1158, 96
    %v1197 = vpop.permute.xlu0 %1196
    %v1198 = vld [vmem:[#allocation7 + $0x1b] sm:$0x1]
    %v1199 = vlaneseq
    %v1200 = vshrl.u32 %v1199, 7
    %v1201 = vsub.s32 0, %v1200
    %v1202 = vrot.slane %v1198, %v1201
    %v1203 = vmul.f32 %v1195, %v1202
    %v1204 = vmul.f32 %v1197, %v1202
    %v1205 = vadd.f32 %v1147, %v1203
    %v1206 = vadd.f32 %v1148, %v1204
    %v1207 = vsel %vm464, %v1151, 0.0
    %v1208 = vsel %vm465, %v1152, 0.0
    %v1209 = vld [vmem:[#allocation7 + $0x1c] sm:$0x1]
    %v1210 = vlaneseq
    %v1211 = vshrl.u32 %v1210, 7
    %v1212 = vsub.s32 0, %v1211
    %v1213 = vrot.slane %v1209, %v1212
    %v1214 = vmul.f32 %v1207, %v1213
    %v1215 = vmul.f32 %v1208, %v1213
    %v1216 = vadd.f32 %v1166, %v1214
    %v1217 = vadd.f32 %v1167, %v1215
    %1218 = vrot.lane.b32.xlu0 %v1207, 32
    %v1219 = vpop.permute.xlu0 %1218
    %1220 = vrot.lane.b32.xlu0 %v1208, 32
    %v1221 = vpop.permute.xlu0 %1220
    %v1222 = vld [vmem:[#allocation7 + $0x1d] sm:$0x1]
    %v1223 = vlaneseq
    %v1224 = vshrl.u32 %v1223, 7
    %v1225 = vsub.s32 0, %v1224
    %v1226 = vrot.slane %v1222, %v1225
    %v1227 = vmul.f32 %v1219, %v1226
    %v1228 = vmul.f32 %v1221, %v1226
    %v1229 = vadd.f32 %v1179, %v1227
    %v1230 = vadd.f32 %v1180, %v1228
    %1231 = vrot.lane.b32.xlu0 %v1207, 64
    %v1232 = vpop.permute.xlu0 %1231
    %1233 = vrot.lane.b32.xlu0 %v1208, 64
    %v1234 = vpop.permute.xlu0 %1233
    %v1235 = vld [vmem:[#allocation7 + $0x1e] sm:$0x1]
    %v1236 = vlaneseq
    %v1237 = vshrl.u32 %v1236, 7
    %v1238 = vsub.s32 0, %v1237
    %v1239 = vrot.slane %v1235, %v1238
    %v1240 = vmul.f32 %v1232, %v1239
    %v1241 = vmul.f32 %v1234, %v1239
    %v1242 = vadd.f32 %v1192, %v1240
    %v1243 = vadd.f32 %v1193, %v1241
    %1244 = vrot.lane.b32.xlu0 %v1207, 96
    %v1245 = vpop.permute.xlu0 %1244
    %1246 = vrot.lane.b32.xlu0 %v1208, 96
    %v1247 = vpop.permute.xlu0 %1246
    %v1248 = vld [vmem:[#allocation7 + $0x1f] sm:$0x1]
    %v1249 = vlaneseq
    %v1250 = vshrl.u32 %v1249, 7
    %v1251 = vsub.s32 0, %v1250
    %v1252 = vrot.slane %v1248, %v1251
    %v1253 = vmul.f32 %v1245, %v1252
    %v1254 = vmul.f32 %v1247, %v1252
    %v1255 = vadd.f32 %v1205, %v1253
    %v1256 = vadd.f32 %v1206, %v1254
    %1257 = vrot.lane.b32.xlu0 %v1151, 127
    %v1258 = vpop.permute.xlu0 %1257
    %1259 = vrot.lane.b32.xlu0 %v1152, 127
    %v1260 = vpop.permute.xlu0 %1259
    %v1261 = vsel %vm572, %v1258, 0.0
    %v1262 = vsel %vm573, %v1260, 0.0
    %v1263 = vld [vmem:[#allocation7 + $0x20] sm:$0x1]
    %v1264 = vlaneseq
    %v1265 = vshrl.u32 %v1264, 7
    %v1266 = vsub.s32 0, %v1265
    %v1267 = vrot.slane %v1263, %v1266
    %v1268 = vmul.f32 %v1261, %v1267
    %v1269 = vmul.f32 %v1262, %v1267
    %v1270 = vadd.f32 %v1216, %v1268
    %v1271 = vadd.f32 %v1217, %v1269
    %1272 = vrot.lane.b32.xlu0 %v1261, 32
    %v1273 = vpop.permute.xlu0 %1272
    %1274 = vrot.lane.b32.xlu0 %v1262, 32
    %v1275 = vpop.permute.xlu0 %1274
    %v1276 = vld [vmem:[#allocation7 + $0x21] sm:$0x1]
    %v1277 = vlaneseq
    %v1278 = vshrl.u32 %v1277, 7
    %v1279 = vsub.s32 0, %v1278
    %v1280 = vrot.slane %v1276, %v1279
    %v1281 = vmul.f32 %v1273, %v1280
    %v1282 = vmul.f32 %v1275, %v1280
    %v1283 = vadd.f32 %v1229, %v1281
    %v1284 = vadd.f32 %v1230, %v1282
    %1285 = vrot.lane.b32.xlu0 %v1261, 64
    %v1286 = vpop.permute.xlu0 %1285
    %1287 = vrot.lane.b32.xlu0 %v1262, 64
    %v1288 = vpop.permute.xlu0 %1287
    %v1289 = vld [vmem:[#allocation7 + $0x22] sm:$0x1]
    %v1290 = vlaneseq
    %v1291 = vshrl.u32 %v1290, 7
    %v1292 = vsub.s32 0, %v1291
    %v1293 = vrot.slane %v1289, %v1292
    %v1294 = vmul.f32 %v1286, %v1293
    %v1295 = vmul.f32 %v1288, %v1293
    %v1296 = vadd.f32 %v1242, %v1294
    %v1297 = vadd.f32 %v1243, %v1295
    %1298 = vrot.lane.b32.xlu0 %v1261, 96
    %v1299 = vpop.permute.xlu0 %1298
    %1300 = vrot.lane.b32.xlu0 %v1262, 96
    %v1301 = vpop.permute.xlu0 %1300
    %v1302 = vld [vmem:[#allocation7 + $0x23] sm:$0x1]
    %v1303 = vlaneseq
    %v1304 = vshrl.u32 %v1303, 7
    %v1305 = vsub.s32 0, %v1304
    %v1306 = vrot.slane %v1302, %v1305
    %v1307 = vmul.f32 %v1299, %v1306
    %v1308 = vmul.f32 %v1301, %v1306
    %v1309 = vadd.f32 %v1255, %v1307
    %v1310 = vadd.f32 %v1256, %v1308
    %v1311 = vadd.f32 %v1270, %v1283
    %v1312 = vadd.f32 %v1271, %v1284
    %v1313 = vadd.f32 %v1311, %v1296
    %v1314 = vadd.f32 %v1312, %v1297
    %v1315 = vadd.f32 %v1313, %v1309
    %v1316 = vadd.f32 %v1314, %v1310
    %v1317 = vadd.f32 %v1315, %v1316
    %v1318 = vrot.slane %v1317, 4
    %v1319 = vadd.f32 %v1317, %v1318
    %v1320 = vrot.slane %v1319, 2
    %v1321 = vadd.f32 %v1319, %v1320
    %v1322 = vrot.slane %v1321, 1
    %v1323 = vadd.f32 %v1321, %v1322
    %v1324 = vmul.f32 %v1315, %v1315
    %v1325 = vmul.f32 %v1316, %v1316
    %v1326 = vadd.f32 %v1324, %v1325
    %v1327 = vrot.slane %v1326, 4
    %v1328 = vadd.f32 %v1326, %v1327
    %v1329 = vrot.slane %v1328, 2
    %v1330 = vadd.f32 %v1328, %v1329
    %v1331 = vrot.slane %v1330, 1
    %v1332 = vadd.f32 %v1330, %v1331
    %1333 = vmatprep.subr.mxu0 0.0
    %1334 = vmatpush1.msra.mxu0 %v646
    %1335 = vmatprep.subr.mxu0 0.0
    %1336 = vmatpush1.msra.mxu0 %v647
    %1337 = vmatprep.subr.mxu0 0.0
    %1338 = vmatpush1.msra.mxu0 %v648
    %1339 = vmatprep.subr.mxu0 0.0
    %1340 = vmatpush1.msra.mxu0 %v649
    %1341 = vmatprep.subr.mxu0 0.0
    %1342 = vmatpush1.msra.mxu0 %v650
    %1343 = vmatprep.subr.mxu0 0.0
    %1344 = vmatpush1.msra.mxu0 %v651
    %1345 = vmatprep.subr.mxu0 0.0
    %1346 = vmatpush1.msra.mxu0 %v652
    %1347 = vmatprep.subr.mxu0 0.0
    %1348 = vmatpush1.msra.mxu0 %v653
    %1349 = vmatprep.subr.mxu0 0.0
    %1350 = vmatpush1.msra.mxu0 %v654
    %1351 = vmatprep.subr.mxu0 0.0
    %1352 = vmatpush1.msra.mxu0 %v655
    %1353 = vmatprep.subr.mxu0 0.0
    %1354 = vmatpush1.msra.mxu0 %v656
    %1355 = vmatprep.subr.mxu0 0.0
    %1356 = vmatpush1.msra.mxu0 %v657
    %1357 = vmatprep.subr.mxu0 0.0
    %1358 = vmatpush1.msra.mxu0 %v658
    %1359 = vmatprep.subr.mxu0 0.0
    %1360 = vmatpush1.msra.mxu0 %v659
    %1361 = vmatprep.subr.mxu0 0.0
    %1362 = vmatpush1.msra.mxu0 %v660
    %1363 = vmatprep.subr.mxu0 0.0
    %1364 = vmatpush1.msra.mxu0 %v661
    %1365 = vmatprep.subr.mxu0 0.0
    %1366 = vmatpush1.msra.mxu0 0.0
    %1367 = vmatprep.subr.mxu0 0.0
    %1368 = vmatpush1.msra.mxu0 0.0
    %1369 = vmatprep.subr.mxu0 0.0
    %1370 = vmatpush1.msra.mxu0 0.0
    %1371 = vmatprep.subr.mxu0 0.0
    %1372 = vmatpush1.msra.mxu0 0.0
    %1373 = vmatprep.subr.mxu0 0.0
    %1374 = vmatpush1.msra.mxu0 0.0
    %1375 = vmatprep.subr.mxu0 0.0
    %1376 = vmatpush1.msra.mxu0 0.0
    %1377 = vmatprep.subr.mxu0 0.0
    %1378 = vmatpush1.msra.mxu0 0.0
    %1379 = vmatprep.subr.mxu0 0.0
    %1380 = vmatpush1.msra.mxu0 0.0
    %1381 = vmatprep.subr.mxu0 0.0
    %1382 = vmatpush1.msra.mxu0 0.0
    %1383 = vmatprep.subr.mxu0 0.0
    %1384 = vmatpush1.msra.mxu0 0.0
    %1385 = vmatprep.subr.mxu0 0.0
    %1386 = vmatpush1.msra.mxu0 0.0
    %1387 = vmatprep.subr.mxu0 0.0
    %1388 = vmatpush1.msra.mxu0 0.0
    %1389 = vmatprep.subr.mxu0 0.0
    %1390 = vmatpush1.msra.mxu0 0.0
    %1391 = vmatprep.subr.mxu0 0.0
    %1392 = vmatpush1.msra.mxu0 0.0
    %1393 = vmatprep.subr.mxu0 0.0
    %1394 = vmatpush1.msra.mxu0 0.0
    %1395 = vmatprep.subr.mxu0 0.0
    %1396 = vmatpush1.msra.mxu0 0.0
    %1397 = vmatprep.mubr.f32.mxu0 0.0
    %1398 = vmatmul.mubr.f32.gmra.mrb[0].mxu0 %v1323
    %v1399 = vpop.f32.mrb[0].mxu0
    %v1400 = vadd.f32 0.0, %v1399
    %v1401 = vpop.f32.mrb[0].mxu0
    %1402 = vdwg.mxu0
    %v1403 = vmul.f32 %v1400, 0.001953125
    %1404 = vmatprep.subr.mxu0 0.0
    %1405 = vmatpush1.msra.mxu0 %v646
    %1406 = vmatprep.subr.mxu0 0.0
    %1407 = vmatpush1.msra.mxu0 %v647
    %1408 = vmatprep.subr.mxu0 0.0
    %1409 = vmatpush1.msra.mxu0 %v648
    %1410 = vmatprep.subr.mxu0 0.0
    %1411 = vmatpush1.msra.mxu0 %v649
    %1412 = vmatprep.subr.mxu0 0.0
    %1413 = vmatpush1.msra.mxu0 %v650
    %1414 = vmatprep.subr.mxu0 0.0
    %1415 = vmatpush1.msra.mxu0 %v651
    %1416 = vmatprep.subr.mxu0 0.0
    %1417 = vmatpush1.msra.mxu0 %v652
    %1418 = vmatprep.subr.mxu0 0.0
    %1419 = vmatpush1.msra.mxu0 %v653
    %1420 = vmatprep.subr.mxu0 0.0
    %1421 = vmatpush1.msra.mxu0 %v654
    %1422 = vmatprep.subr.mxu0 0.0
    %1423 = vmatpush1.msra.mxu0 %v655
    %1424 = vmatprep.subr.mxu0 0.0
    %1425 = vmatpush1.msra.mxu0 %v656
    %1426 = vmatprep.subr.mxu0 0.0
    %1427 = vmatpush1.msra.mxu0 %v657
    %1428 = vmatprep.subr.mxu0 0.0
    %1429 = vmatpush1.msra.mxu0 %v658
    %1430 = vmatprep.subr.mxu0 0.0
    %1431 = vmatpush1.msra.mxu0 %v659
    %1432 = vmatprep.subr.mxu0 0.0
    %1433 = vmatpush1.msra.mxu0 %v660
    %1434 = vmatprep.subr.mxu0 0.0
    %1435 = vmatpush1.msra.mxu0 %v661
    %1436 = vmatprep.subr.mxu0 0.0
    %1437 = vmatpush1.msra.mxu0 0.0
    %1438 = vmatprep.subr.mxu0 0.0
    %1439 = vmatpush1.msra.mxu0 0.0
    %1440 = vmatprep.subr.mxu0 0.0
    %1441 = vmatpush1.msra.mxu0 0.0
    %1442 = vmatprep.subr.mxu0 0.0
    %1443 = vmatpush1.msra.mxu0 0.0
    %1444 = vmatprep.subr.mxu0 0.0
    %1445 = vmatpush1.msra.mxu0 0.0
    %1446 = vmatprep.subr.mxu0 0.0
    %1447 = vmatpush1.msra.mxu0 0.0
    %1448 = vmatprep.subr.mxu0 0.0
    %1449 = vmatpush1.msra.mxu0 0.0
    %1450 = vmatprep.subr.mxu0 0.0
    %1451 = vmatpush1.msra.mxu0 0.0
    %1452 = vmatprep.subr.mxu0 0.0
    %1453 = vmatpush1.msra.mxu0 0.0
    %1454 = vmatprep.subr.mxu0 0.0
    %1455 = vmatpush1.msra.mxu0 0.0
    %1456 = vmatprep.subr.mxu0 0.0
    %1457 = vmatpush1.msra.mxu0 0.0
    %1458 = vmatprep.subr.mxu0 0.0
    %1459 = vmatpush1.msra.mxu0 0.0
    %1460 = vmatprep.subr.mxu0 0.0
    %1461 = vmatpush1.msra.mxu0 0.0
    %1462 = vmatprep.subr.mxu0 0.0
    %1463 = vmatpush1.msra.mxu0 0.0
    %1464 = vmatprep.subr.mxu0 0.0
    %1465 = vmatpush1.msra.mxu0 0.0
    %1466 = vmatprep.subr.mxu0 0.0
    %1467 = vmatpush1.msra.mxu0 0.0
    %1468 = vmatprep.mubr.f32.mxu0 0.0
    %1469 = vmatmul.mubr.f32.gmra.mrb[0].mxu0 %v1332
    %v1470 = vpop.f32.mrb[0].mxu0
    %v1471 = vadd.f32 0.0, %v1470
    %v1472 = vpop.f32.mrb[0].mxu0
    %1473 = vdwg.mxu0
    %v1474 = vmul.f32 %v1471, 0.001953125
    %v1475 = vmul.f32 %v1403, %v1403
    %v1476 = vsub.f32 %v1474, %v1475
    %v1477 = vadd.f32 %v1476, 1e-05
    %v1478 = vrsqrt.pop %v1477
    %v1479 = vld [vmem:[%s4] sm:$0x1]
    %v1480 = vld [vmem:[%s4 + $0x1] sm:$0x1]
    %v1481 = vlaneseq
    %v1482 = vshrl.u32 %v1481, 7
    %v1483 = vsub.s32 0, %v1482
    %v1484 = vrot.slane %v1403, %v1483
    %v1485 = vsub.f32 %v1315, %v1484
    %v1486 = vsub.f32 %v1316, %v1484
    %v1487 = vmul.f32 %v1478, %v1479
    %v1488 = vlaneseq
    %v1489 = vshrl.u32 %v1488, 7
    %v1490 = vsub.s32 0, %v1489
    %v1491 = vrot.slane %v1487, %v1490
    %v1492 = vmul.f32 %v1485, %v1491
    %v1493 = vmul.f32 %v1486, %v1491
    %v1494 = vlaneseq
    %v1495 = vshrl.u32 %v1494, 7
    %v1496 = vsub.s32 0, %v1495
    %v1497 = vrot.slane %v1480, %v1496
    %v1498 = vadd.f32 %v1492, %v1497
    %v1499 = vadd.f32 %v1493, %v1497
    %v1500 = vadd.f32 %v1498, %v79
    %v1501 = vadd.f32 %v1499, %v80
    %v1502 = vmax.f32 %v1500, 0.0
    %v1503 = vmax.f32 %v1501, 0.0
    %1504 = vst [vmem:[#allocation10] sm:$0xff] %v1502
    %1505 = vst [vmem:[#allocation10 + $0x8] sm:$0xff] %v1503
    // Predicated region
    $region42: #{tpu_custom_call.1} parent=1 // pred_check
      _
    $region43: #{tpu_custom_call.1} parent=1 // pred_check_branch
      %1507 = sbr.rel (0) target = $region45
    $region44: #{tpu_custom_call.1} parent=1 // pred_region
      %s1509 = ssub.s32 256, 256
      %1510 = vsyncadd [#allocation4], %s1509
      %s1511 = sshll.u32 [#allocation10], 4
      %s1512 = int_to_ptr.vmem [resolvable:$true] %s1511
      %1517 = dma.vmem_to_hbm [thread:$0]  %s1512, 256, %s6, [#allocation4], 128, 128, 8
    $region45: #{tpu_custom_call.1} parent=1 // pred_fallthru
      _
    // Predicated region
    $region46: #{tpu_custom_call.1} parent=1 // pred_check
      _
    $region47: #{tpu_custom_call.1} parent=1 // pred_check_branch
      %1519 = sbr.rel (0) target = $region49
    $region48: #{tpu_custom_call.1} parent=1 // pred_region
      %1520 = dma.done [#allocation4], 256
    $region49: #{tpu_custom_call.1} parent=1 // pred_fallthru
      _
    %1521 = vsyncpa [#allocation3], 1
    %1522 = vsyncpa [#allocation6], 1
    %1523 = vsyncpa [#allocation9], 1
    %1524 = vsyncpa [#allocation4], 1

</llo_original>
